<compile_context>
chip_gen: v7x
topology: tpu7x:2x2x1
jax: 0.10.0
libtpu: 0.0.40
codegen_flags: <defaults>
</compile_context>

<pallas_src>
import numpy as np
import jax
import jax.numpy as jnp
from jax import lax
from jax.experimental import pallas as pl
from jax.experimental.pallas import tpu as pltpu


# ---------------------------------------------------------------------------
# The fused kernel: conv1 -> pool -> relu -> conv2 -> pool -> relu -> fc1 ->
# relu -> output -> log_softmax, for one batch tile of `tb` images.
#   x_ref    : [28, tb, 28]   raw image, (row, batch, col)
#   w1_ref   : [140, 256]     conv1 im2row RHS, K=(di,col), N=(b1 | tj,c)
#   w2_ref   : [640, 256]     conv2 im2row RHS, K=(di | j,ci), N=(b2 | uj,co)
#   fw1_ref  : [512, 50]      fc1 (torch NCHW flatten folded into row order)
#   fw2_ref  : [50, 128]      output weights, N padded to 128 lanes
#   bias_ref : [4, 128]       [b1 tiled | b2 tiled | fb1 | fb2 (pad=-1e30)]
#   o_ref    : [tb, 128]      log_softmax (lanes 0..9 valid)
# ---------------------------------------------------------------------------
def _fused_forward_kernel(x_ref, w1_ref, w2_ref, fw1_ref, fw2_ref, bias_ref,
                          o_ref):
    tb = x_ref.shape[1]
    f32 = jnp.float32
    x = x_ref[...]                                   # [28, tb, 28]
    biases = bias_ref[...]                           # [4, 128]

    # ---- conv1 (5x5, 1->10) + 2x2 max-pool + ReLU, as ONE matmul -----------
    # rows = (oi, n), K = (di, col), N = (b1-half, tj, c)
    lhs1 = jnp.concatenate([x[di:di + 24] for di in range(5)], axis=-1)
    c1 = jnp.dot(lhs1.reshape(24 * tb, 5 * 28), w1_ref[...],
                 preferred_element_type=f32)          # [24*tb, 256]
    c1 = c1.reshape(12, 2, tb, 256)                   # oi = 2*ti + a1
    c1 = jnp.maximum(c1[:, 0], c1[:, 1])              # pool rows (a1)
    c1 = jnp.maximum(c1[:, :, :128], c1[:, :, 128:])  # pool cols (b1)
    y1 = jnp.maximum(c1 + biases[0:1, :], 0.0)        # [12, tb, 128], lanes tj*10+c

    # ---- conv2 (5x5, 10->20) + 2x2 max-pool + ReLU, as ONE matmul ----------
    # rows = (oi2, n), K = (di, j, ci) 128-aligned per di, N = (b2-half, uj, co)
    lhs2 = jnp.concatenate([y1[di:di + 8] for di in range(5)], axis=-1)
    c2 = jnp.dot(lhs2.reshape(8 * tb, 5 * 128), w2_ref[...],
                 preferred_element_type=f32)          # [8*tb, 256]
    c2 = c2.reshape(4, 2, tb, 256)                    # oi2 = 2*ui + a2
    c2 = jnp.maximum(c2[:, 0], c2[:, 1])              # pool rows (a2)
    c2 = jnp.maximum(c2[:, :, :128], c2[:, :, 128:])  # pool cols (b2)
    y2 = jnp.maximum(c2 + biases[1:2, :], 0.0)        # [4, tb, 128], lanes uj*20+co

    # ---- head: flatten -> fc1 -> ReLU -> output -> log_softmax -------------
    flat = jnp.concatenate([y2[ui] for ui in range(4)], axis=-1)   # [tb, 512]
    h = jnp.maximum(
        jnp.dot(flat, fw1_ref[...], preferred_element_type=f32) + biases[2:3, :50],
        0.0)                                                        # [tb, 50]
    z = jnp.dot(h, fw2_ref[...], preferred_element_type=f32) + biases[3:4, :]
    zmax = jnp.max(z, axis=-1, keepdims=True)
    lse = jnp.log(jnp.sum(jnp.exp(z - zmax), axis=-1, keepdims=True))
    o_ref[...] = (z - zmax - lse).astype(o_ref.dtype)               # [tb, 128]


# ---------------------------------------------------------------------------
# Wrapper: batch-tiled grid, parallel semantics, lane-dense output.
# ---------------------------------------------------------------------------
def _round_up(v, m):
    return ((v + m - 1) // m) * m


def _choose_tile_b(n, tile_b):
    tb = max(8, (int(tile_b) // 8) * 8)               # sublane-aligned tiles
    n8 = _round_up(n, 8)
    tb = min(tb, n8)
    # v7x has 2 TensorCores: prefer >=2 grid steps when the batch allows it.
    if n8 // tb < 2 and (n8 // 2) >= 8:
        tb = ((n8 // 2) // 8) * 8
    return tb


def forward(x, kparams, *, tile_b=32):
    if x.shape[1] != 1 or x.shape[2] != 28 or x.shape[3] != 28:
        raise ValueError("Expected each sample to have shape [1, 28, 28]")
    n = x.shape[0]
    # spatial-major layout: [row, batch, col] so in-kernel windows are
    # leading-dim slices and the batch dim sits on sublanes.
    xT = jnp.transpose(x[:, 0].astype(jnp.float32), (1, 0, 2))     # [28, N, 28]

    tb = _choose_tile_b(n, tile_b)
    n_pad = pl.cdiv(n, tb) * tb
    if n_pad != n:
        xT = jnp.pad(xT, ((0, 0), (0, n_pad - n), (0, 0)))
    grid = (n_pad // tb,)

    def const_spec(shape):
        nd = len(shape)
        return pl.BlockSpec(shape, lambda i, nd=nd: (0,) * nd)

    weight_bytes = 4 * (140 * 256 + 640 * 256 + 512 * 50 + 50 * 128 + 4 * 128)
    flops = 2 * int(n_pad) * (24 * 140 * 256 + 8 * 640 * 256 + 512 * 50 + 50 * 128)
    bytes_accessed = int(n_pad) * (28 * 28 * 4 + 128 * 4) + weight_bytes

    out = pl.pallas_call(
        _fused_forward_kernel,
        out_shape=jax.ShapeDtypeStruct((n_pad, 128), jnp.float32),
        grid=grid,
        in_specs=[
            pl.BlockSpec((28, tb, 28), lambda i: (0, i, 0)),   # raw image tile
            const_spec((140, 256)),     # conv1 RHS
            const_spec((640, 256)),     # conv2 RHS
            const_spec((512, 50)),      # fc1 (permuted, lane-padded rows)
            const_spec((50, 128)),      # output (N padded to 128)
            const_spec((4, 128)),       # packed biases
        ],
        out_specs=pl.BlockSpec((tb, 128), lambda i: (i, 0)),
        compiler_params=pltpu.CompilerParams(
            dimension_semantics=("parallel",),
            vmem_limit_bytes=48 * 1024 * 1024),
        cost_estimate=pl.CostEstimate(
            flops=flops,
            transcendentals=int(n_pad) * 129,
            bytes_accessed=bytes_accessed),
    )(xT, kparams["w1"], kparams["w2"], kparams["fw1"], kparams["fw2"],
      kparams["bias"])
    return out[:n, :10]


# ---------------------------------------------------------------------------
# Parameters (base layout mirrors PyTorch) and kernel-layout preparation.
# ---------------------------------------------------------------------------
def make_params(key):
    ks = jax.random.split(key, 8)
    return {
        "w1k": jax.random.normal(ks[0], (5, 5, 1, 10), jnp.float32) * 0.1,   # HWIO
        "b1":  jax.random.normal(ks[1], (10,), jnp.float32) * 0.1,
        "w2k": jax.random.normal(ks[2], (5, 5, 10, 20), jnp.float32) * 0.05,
        "b2":  jax.random.normal(ks[3], (20,), jnp.float32) * 0.1,
        "fw1": jax.random.normal(ks[4], (320, 50), jnp.float32) * 0.05,      # torch flat order
        "fb1": jax.random.normal(ks[5], (50,), jnp.float32) * 0.1,
        "fw2": jax.random.normal(ks[6], (50, 10), jnp.float32) * 0.1,
        "fb2": jax.random.normal(ks[7], (10,), jnp.float32) * 0.1,
    }


def prep_kernel_params(p):
    w1k = np.asarray(p["w1k"], np.float32)      # [5,5,1,10]  (kh, kw, 1, co)
    w2k = np.asarray(p["w2k"], np.float32)      # [5,5,10,20] (kh, kw, ci, co)
    fw1 = np.asarray(p["fw1"], np.float32)      # [320, 50]
    fw2 = np.asarray(p["fw2"], np.float32)      # [50, 10]
    b1 = np.asarray(p["b1"], np.float32)
    b2 = np.asarray(p["b2"], np.float32)
    fb1 = np.asarray(p["fb1"], np.float32)
    fb2 = np.asarray(p["fb2"], np.float32)

    # conv1 RHS: K = di*28 + col, N = pool_b1*128 + tj*10 + c.
    W1 = np.zeros((140, 256), np.float32)
    for di in range(5):
        for dj in range(5):
            for pb in range(2):
                for tj in range(12):
                    col = 2 * tj + pb + dj                          # 0..27
                    off = pb * 128 + tj * 10
                    W1[di * 28 + col, off:off + 10] = w1k[di, dj, 0, :]

    # conv2 RHS: K = di*128 + j*10 + ci, N = pool_b2*128 + uj*20 + co.
    W2 = np.zeros((640, 256), np.float32)
    for di in range(5):
        for dj in range(5):
            for pb in range(2):
                for uj in range(4):
                    j = 2 * uj + pb + dj                            # 0..11
                    off = pb * 128 + uj * 20
                    for ci in range(10):
                        W2[di * 128 + j * 10 + ci, off:off + 20] = w2k[di, dj, ci, :]

    # fc1: fold torch NCHW flatten (co*16 + ui*4 + uj) into the kernel's flat
    # layout rows (ui*128 + uj*20 + co); lane-pad rows stay zero.
    FW1 = np.zeros((512, 50), np.float32)
    for ui in range(4):
        for uj in range(4):
            for co in range(20):
                FW1[ui * 128 + uj * 20 + co, :] = fw1[co * 16 + ui * 4 + uj, :]

    FW2 = np.zeros((50, 128), np.float32)
    FW2[:, :10] = fw2

    BIAS = np.zeros((4, 128), np.float32)
    BIAS[0, :120] = np.tile(b1, 12)      # conv1 bias per (tj, c) lane
    BIAS[1, :80] = np.tile(b2, 4)        # conv2 bias per (uj, co) lane
    BIAS[2, :50] = fb1                   # fc1 bias
    BIAS[3, :] = -1e30                   # pad logits never win the softmax
    BIAS[3, :10] = fb2                   # output bias

    return {"w1": jnp.asarray(W1), "w2": jnp.asarray(W2),
            "fw1": jnp.asarray(FW1), "fw2": jnp.asarray(FW2),
            "bias": jnp.asarray(BIAS)}


# ---------------------------------------------------------------------------
# Pure-JAX reference (mirrors the PyTorch module exactly).
# ---------------------------------------------------------------------------
def reference(x, p):
    w1 = jnp.transpose(p["w1k"], (3, 2, 0, 1))            # OIHW
    w2 = jnp.transpose(p["w2k"], (3, 2, 0, 1))
    y = lax.conv_general_dilated(x, w1, (1, 1), "VALID") + p["b1"].reshape(1, -1, 1, 1)
    y = lax.reduce_window(y, -jnp.inf, lax.max, (1, 1, 2, 2), (1, 1, 2, 2), "VALID")
    y = jnp.maximum(y, 0.0)
    y = lax.conv_general_dilated(y, w2, (1, 1), "VALID") + p["b2"].reshape(1, -1, 1, 1)
    y = lax.reduce_window(y, -jnp.inf, lax.max, (1, 1, 2, 2), (1, 1, 2, 2), "VALID")
    y = jnp.maximum(y, 0.0)
    flat = y.reshape(y.shape[0], 320)                     # NCHW flatten, like torch
    h = jnp.maximum(flat @ p["fw1"] + p["fb1"], 0.0)
    z = h @ p["fw2"] + p["fb2"]
    return jax.nn.log_softmax(z, axis=1)


# ---------------------------------------------------------------------------
if __name__ == "__main__":
    key = jax.random.PRNGKey(0)
    kx, kp = jax.random.split(key)
    x = jax.random.normal(kx, (2, 1, 28, 28), jnp.float32)   # batch=2 MNIST-shaped
    params = make_params(kp)
    kparams = prep_kernel_params(params)

    out = jax.block_until_ready(jax.jit(forward)(x, kparams))
    ref = jax.block_until_ready(reference(x, params))

    assert out.shape == (2, 10)
    assert jnp.allclose(out, ref, atol=5e-4, rtol=5e-4), (out, ref)
    print("KERNEL_OK")
</pallas_src>

<mosaic_0001>
module attributes {stable_mosaic.version = 11 : i64} {
  func.func @_fused_forward_kernel(%arg0: i32, %arg1: memref<28x8x28xf32, #tpu.memory_space<vmem>>, %arg2: memref<140x256xf32, #tpu.memory_space<vmem>>, %arg3: memref<640x256xf32, #tpu.memory_space<vmem>>, %arg4: memref<512x50xf32, #tpu.memory_space<vmem>>, %arg5: memref<50x128xf32, #tpu.memory_space<vmem>>, %arg6: memref<4x128xf32, #tpu.memory_space<vmem>>, %arg7: memref<8x128xf32, #tpu.memory_space<vmem>>) attributes {dimension_semantics = [#tpu.dimension_semantics<parallel>], iteration_bounds = array<i64: 1>, scalar_prefetch = 0 : i64, scratch_operands = 0 : i64, tpu.core_type = #tpu.core_type<tc>, window_params = [{transform_indices = @transform_0, window_bounds = array<i64: 28, 8, 28>}, {pipeline_mode = #tpu.pipeline_mode<synchronous>, transform_indices = @transform_1, window_bounds = array<i64: 140, 256>}, {pipeline_mode = #tpu.pipeline_mode<synchronous>, transform_indices = @transform_2, window_bounds = array<i64: 640, 256>}, {pipeline_mode = #tpu.pipeline_mode<synchronous>, transform_indices = @transform_3, window_bounds = array<i64: 512, 50>}, {pipeline_mode = #tpu.pipeline_mode<synchronous>, transform_indices = @transform_4, window_bounds = array<i64: 50, 128>}, {pipeline_mode = #tpu.pipeline_mode<synchronous>, transform_indices = @transform_5, window_bounds = array<i64: 4, 128>}, {transform_indices = @transform_6, window_bounds = array<i64: 8, 128>}]} {
    %c0 = arith.constant 0 : index
    %c0_0 = arith.constant 0 : index
    %c0_1 = arith.constant 0 : index
    %0 = vector.load %arg1[%c0, %c0_0, %c0_1] : memref<28x8x28xf32, #tpu.memory_space<vmem>>, vector<28x8x28xf32>
    %c0_2 = arith.constant 0 : index
    %c0_3 = arith.constant 0 : index
    %1 = vector.load %arg6[%c0_2, %c0_3] : memref<4x128xf32, #tpu.memory_space<vmem>>, vector<4x128xf32>
    %2 = vector.extract_strided_slice %0 {offsets = [0, 0, 0], sizes = [24, 8, 28], strides = [1, 1, 1]} : vector<28x8x28xf32> to vector<24x8x28xf32>
    %3 = vector.extract_strided_slice %0 {offsets = [1, 0, 0], sizes = [24, 8, 28], strides = [1, 1, 1]} : vector<28x8x28xf32> to vector<24x8x28xf32>
    %4 = vector.extract_strided_slice %0 {offsets = [2, 0, 0], sizes = [24, 8, 28], strides = [1, 1, 1]} : vector<28x8x28xf32> to vector<24x8x28xf32>
    %5 = vector.extract_strided_slice %0 {offsets = [3, 0, 0], sizes = [24, 8, 28], strides = [1, 1, 1]} : vector<28x8x28xf32> to vector<24x8x28xf32>
    %6 = vector.extract_strided_slice %0 {offsets = [4, 0, 0], sizes = [24, 8, 28], strides = [1, 1, 1]} : vector<28x8x28xf32> to vector<24x8x28xf32>
    %7 = tpu.concatenate %2, %3, %4, %5, %6 in 2 : vector<24x8x28xf32>, vector<24x8x28xf32>, vector<24x8x28xf32>, vector<24x8x28xf32>, vector<24x8x28xf32> -> vector<24x8x140xf32>
    %8 = vector.shape_cast %7 : vector<24x8x140xf32> to vector<192x140xf32>
    %c0_4 = arith.constant 0 : index
    %c0_5 = arith.constant 0 : index
    %9 = vector.load %arg2[%c0_4, %c0_5] : memref<140x256xf32, #tpu.memory_space<vmem>>, vector<140x256xf32>
    %cst = arith.constant dense<0.000000e+00> : vector<192x256xf32>
    %10 = tpu.matmul %8, %9, %cst {dimension_numbers = #tpu.dot_dimension_numbers<[1], [0], [0], [1], [0, 0, 1, 1], [], []>} : vector<192x140xf32>, vector<140x256xf32>, vector<192x256xf32> -> vector<192x256xf32>
    %11 = vector.shape_cast %10 : vector<192x256xf32> to vector<12x2x8x256xf32>
    %12 = vector.extract_strided_slice %11 {offsets = [0, 0, 0, 0], sizes = [12, 1, 8, 256], strides = [1, 1, 1, 1]} : vector<12x2x8x256xf32> to vector<12x1x8x256xf32>
    %13 = vector.shape_cast %12 : vector<12x1x8x256xf32> to vector<12x8x256xf32>
    %14 = vector.extract_strided_slice %11 {offsets = [0, 1, 0, 0], sizes = [12, 1, 8, 256], strides = [1, 1, 1, 1]} : vector<12x2x8x256xf32> to vector<12x1x8x256xf32>
    %15 = vector.shape_cast %14 : vector<12x1x8x256xf32> to vector<12x8x256xf32>
    %16 = arith.maximumf %13, %15 : vector<12x8x256xf32>
    %17 = vector.extract_strided_slice %16 {offsets = [0, 0, 0], sizes = [12, 8, 128], strides = [1, 1, 1]} : vector<12x8x256xf32> to vector<12x8x128xf32>
    %18 = vector.extract_strided_slice %16 {offsets = [0, 0, 128], sizes = [12, 8, 128], strides = [1, 1, 1]} : vector<12x8x256xf32> to vector<12x8x128xf32>
    %19 = arith.maximumf %17, %18 : vector<12x8x128xf32>
    %20 = vector.extract_strided_slice %1 {offsets = [0, 0], sizes = [1, 128], strides = [1, 1]} : vector<4x128xf32> to vector<1x128xf32>
    %21 = vector.shape_cast %20 : vector<1x128xf32> to vector<1x1x128xf32>
    %22 = vector.broadcast %21 : vector<1x1x128xf32> to vector<12x8x128xf32>
    %23 = arith.addf %19, %22 : vector<12x8x128xf32>
    %cst_6 = arith.constant 0.000000e+00 : f32
    %24 = vector.broadcast %cst_6 : f32 to vector<12x8x128xf32>
    %25 = arith.maximumf %23, %24 : vector<12x8x128xf32>
    %26 = vector.extract_strided_slice %25 {offsets = [0, 0, 0], sizes = [8, 8, 128], strides = [1, 1, 1]} : vector<12x8x128xf32> to vector<8x8x128xf32>
    %27 = vector.extract_strided_slice %25 {offsets = [1, 0, 0], sizes = [8, 8, 128], strides = [1, 1, 1]} : vector<12x8x128xf32> to vector<8x8x128xf32>
    %28 = vector.extract_strided_slice %25 {offsets = [2, 0, 0], sizes = [8, 8, 128], strides = [1, 1, 1]} : vector<12x8x128xf32> to vector<8x8x128xf32>
    %29 = vector.extract_strided_slice %25 {offsets = [3, 0, 0], sizes = [8, 8, 128], strides = [1, 1, 1]} : vector<12x8x128xf32> to vector<8x8x128xf32>
    %30 = vector.extract_strided_slice %25 {offsets = [4, 0, 0], sizes = [8, 8, 128], strides = [1, 1, 1]} : vector<12x8x128xf32> to vector<8x8x128xf32>
    %31 = tpu.concatenate %26, %27, %28, %29, %30 in 2 : vector<8x8x128xf32>, vector<8x8x128xf32>, vector<8x8x128xf32>, vector<8x8x128xf32>, vector<8x8x128xf32> -> vector<8x8x640xf32>
    %32 = vector.shape_cast %31 : vector<8x8x640xf32> to vector<64x640xf32>
    %c0_7 = arith.constant 0 : index
    %c0_8 = arith.constant 0 : index
    %33 = vector.load %arg3[%c0_7, %c0_8] : memref<640x256xf32, #tpu.memory_space<vmem>>, vector<640x256xf32>
    %cst_9 = arith.constant dense<0.000000e+00> : vector<64x256xf32>
    %34 = tpu.matmul %32, %33, %cst_9 {dimension_numbers = #tpu.dot_dimension_numbers<[1], [0], [0], [1], [0, 0, 1, 1], [], []>} : vector<64x640xf32>, vector<640x256xf32>, vector<64x256xf32> -> vector<64x256xf32>
    %35 = vector.shape_cast %34 : vector<64x256xf32> to vector<4x2x8x256xf32>
    %36 = vector.extract_strided_slice %35 {offsets = [0, 0, 0, 0], sizes = [4, 1, 8, 256], strides = [1, 1, 1, 1]} : vector<4x2x8x256xf32> to vector<4x1x8x256xf32>
    %37 = vector.shape_cast %36 : vector<4x1x8x256xf32> to vector<4x8x256xf32>
    %38 = vector.extract_strided_slice %35 {offsets = [0, 1, 0, 0], sizes = [4, 1, 8, 256], strides = [1, 1, 1, 1]} : vector<4x2x8x256xf32> to vector<4x1x8x256xf32>
    %39 = vector.shape_cast %38 : vector<4x1x8x256xf32> to vector<4x8x256xf32>
    %40 = arith.maximumf %37, %39 : vector<4x8x256xf32>
    %41 = vector.extract_strided_slice %40 {offsets = [0, 0, 0], sizes = [4, 8, 128], strides = [1, 1, 1]} : vector<4x8x256xf32> to vector<4x8x128xf32>
    %42 = vector.extract_strided_slice %40 {offsets = [0, 0, 128], sizes = [4, 8, 128], strides = [1, 1, 1]} : vector<4x8x256xf32> to vector<4x8x128xf32>
    %43 = arith.maximumf %41, %42 : vector<4x8x128xf32>
    %44 = vector.extract_strided_slice %1 {offsets = [1, 0], sizes = [1, 128], strides = [1, 1]} : vector<4x128xf32> to vector<1x128xf32>
    %45 = vector.shape_cast %44 : vector<1x128xf32> to vector<1x1x128xf32>
    %46 = vector.broadcast %45 : vector<1x1x128xf32> to vector<4x8x128xf32>
    %47 = arith.addf %43, %46 : vector<4x8x128xf32>
    %cst_10 = arith.constant 0.000000e+00 : f32
    %48 = vector.broadcast %cst_10 : f32 to vector<4x8x128xf32>
    %49 = arith.maximumf %47, %48 : vector<4x8x128xf32>
    %50 = vector.extract_strided_slice %49 {offsets = [0, 0, 0], sizes = [1, 8, 128], strides = [1, 1, 1]} : vector<4x8x128xf32> to vector<1x8x128xf32>
    %51 = vector.shape_cast %50 : vector<1x8x128xf32> to vector<8x128xf32>
    %52 = vector.extract_strided_slice %49 {offsets = [1, 0, 0], sizes = [1, 8, 128], strides = [1, 1, 1]} : vector<4x8x128xf32> to vector<1x8x128xf32>
    %53 = vector.shape_cast %52 : vector<1x8x128xf32> to vector<8x128xf32>
    %54 = vector.extract_strided_slice %49 {offsets = [2, 0, 0], sizes = [1, 8, 128], strides = [1, 1, 1]} : vector<4x8x128xf32> to vector<1x8x128xf32>
    %55 = vector.shape_cast %54 : vector<1x8x128xf32> to vector<8x128xf32>
    %56 = vector.extract_strided_slice %49 {offsets = [3, 0, 0], sizes = [1, 8, 128], strides = [1, 1, 1]} : vector<4x8x128xf32> to vector<1x8x128xf32>
    %57 = vector.shape_cast %56 : vector<1x8x128xf32> to vector<8x128xf32>
    %58 = tpu.concatenate %51, %53, %55, %57 in 1 : vector<8x128xf32>, vector<8x128xf32>, vector<8x128xf32>, vector<8x128xf32> -> vector<8x512xf32>
    %c0_11 = arith.constant 0 : index
    %c0_12 = arith.constant 0 : index
    %59 = vector.load %arg4[%c0_11, %c0_12] : memref<512x50xf32, #tpu.memory_space<vmem>>, vector<512x50xf32>
    %cst_13 = arith.constant dense<0.000000e+00> : vector<8x50xf32>
    %60 = tpu.matmul %58, %59, %cst_13 {dimension_numbers = #tpu.dot_dimension_numbers<[1], [0], [0], [1], [0, 0, 1, 1], [], []>} : vector<8x512xf32>, vector<512x50xf32>, vector<8x50xf32> -> vector<8x50xf32>
    %61 = vector.extract_strided_slice %1 {offsets = [2, 0], sizes = [1, 50], strides = [1, 1]} : vector<4x128xf32> to vector<1x50xf32>
    %62 = vector.broadcast %61 : vector<1x50xf32> to vector<8x50xf32>
    %63 = arith.addf %60, %62 : vector<8x50xf32>
    %cst_14 = arith.constant 0.000000e+00 : f32
    %64 = vector.broadcast %cst_14 : f32 to vector<8x50xf32>
    %65 = arith.maximumf %63, %64 : vector<8x50xf32>
    %c0_15 = arith.constant 0 : index
    %c0_16 = arith.constant 0 : index
    %66 = vector.load %arg5[%c0_15, %c0_16] : memref<50x128xf32, #tpu.memory_space<vmem>>, vector<50x128xf32>
    %cst_17 = arith.constant dense<0.000000e+00> : vector<8x128xf32>
    %67 = tpu.matmul %65, %66, %cst_17 {dimension_numbers = #tpu.dot_dimension_numbers<[1], [0], [0], [1], [0, 0, 1, 1], [], []>} : vector<8x50xf32>, vector<50x128xf32>, vector<8x128xf32> -> vector<8x128xf32>
    %68 = vector.extract_strided_slice %1 {offsets = [3, 0], sizes = [1, 128], strides = [1, 1]} : vector<4x128xf32> to vector<1x128xf32>
    %69 = vector.broadcast %68 : vector<1x128xf32> to vector<8x128xf32>
    %70 = arith.addf %67, %69 : vector<8x128xf32>
    %cst_18 = arith.constant dense<0xFF800000> : vector<8xf32>
    %71 = vector.multi_reduction <maximumf>, %70, %cst_18 [1] : vector<8x128xf32> to vector<8xf32>
    %72 = vector.shape_cast %71 : vector<8xf32> to vector<8x1xf32>
    %73 = vector.broadcast %72 : vector<8x1xf32> to vector<8x128xf32>
    %74 = arith.subf %70, %73 : vector<8x128xf32>
    %75 = math.exp %74 : vector<8x128xf32>
    %cst_19 = arith.constant dense<0.000000e+00> : vector<8xf32>
    %76 = vector.multi_reduction <add>, %75, %cst_19 [1] : vector<8x128xf32> to vector<8xf32>
    %77 = vector.shape_cast %76 : vector<8xf32> to vector<8x1xf32>
    %78 = math.log %77 : vector<8x1xf32>
    %79 = vector.broadcast %72 : vector<8x1xf32> to vector<8x128xf32>
    %80 = arith.subf %70, %79 : vector<8x128xf32>
    %81 = vector.broadcast %78 : vector<8x1xf32> to vector<8x128xf32>
    %82 = arith.subf %80, %81 : vector<8x128xf32>
    %c0_20 = arith.constant 0 : index
    %c0_21 = arith.constant 0 : index
    %83 = vector.load %arg7[%c0_20, %c0_21] : memref<8x128xf32, #tpu.memory_space<vmem>>, vector<8x128xf32>
    tpu.vector_store %arg7[%c0_20, %c0_21], %82 {strides = array<i32>} : memref<8x128xf32, #tpu.memory_space<vmem>>, vector<8x128xf32>,
    return
  }
  func.func @transform_0(%arg0: i32) -> (i32, i32, i32) {
    %c0_i32 = arith.constant 0 : i32
    %c0_i32_0 = arith.constant 0 : i32
    %c0_i32_1 = arith.constant 0 : i32
    return %c0_i32, %arg0, %c0_i32_0 : i32, i32, i32
  }
  func.func @transform_1(%arg0: i32) -> (i32, i32) {
    %c0_i32 = arith.constant 0 : i32
    %c0_i32_0 = arith.constant 0 : i32
    %c0_i32_1 = arith.constant 0 : i32
    return %c0_i32, %c0_i32_0 : i32, i32
  }
  func.func @transform_2(%arg0: i32) -> (i32, i32) {
    %c0_i32 = arith.constant 0 : i32
    %c0_i32_0 = arith.constant 0 : i32
    %c0_i32_1 = arith.constant 0 : i32
    return %c0_i32, %c0_i32_0 : i32, i32
  }
  func.func @transform_3(%arg0: i32) -> (i32, i32) {
    %c0_i32 = arith.constant 0 : i32
    %c0_i32_0 = arith.constant 0 : i32
    %c0_i32_1 = arith.constant 0 : i32
    return %c0_i32, %c0_i32_0 : i32, i32
  }
  func.func @transform_4(%arg0: i32) -> (i32, i32) {
    %c0_i32 = arith.constant 0 : i32
    %c0_i32_0 = arith.constant 0 : i32
    %c0_i32_1 = arith.constant 0 : i32
    return %c0_i32, %c0_i32_0 : i32, i32
  }
  func.func @transform_5(%arg0: i32) -> (i32, i32) {
    %c0_i32 = arith.constant 0 : i32
    %c0_i32_0 = arith.constant 0 : i32
    %c0_i32_1 = arith.constant 0 : i32
    return %c0_i32, %c0_i32_0 : i32, i32
  }
  func.func @transform_6(%arg0: i32) -> (i32, i32) {
    %c0_i32 = arith.constant 0 : i32
    %c0_i32_0 = arith.constant 0 : i32
    return %arg0, %c0_i32 : i32, i32
  }
}

</mosaic_0001>

<llo_original>
// kernel: forward.1
$region0: #{forward.1}
  #allocation0 [shape = 'u32[]', space=smem, size = 0x4, offset = 0x4, fixed_abs, tag = 'smem constant byte address 0x4 - core index']
  #allocation1 [shape = 'u32[144,128]{1,0:T(1,128)}', space=vmem, size = 0x12000, scoped, tag = 'internal scratch']
  %s0 = inlined_call_operand.vmem [shape: f32[28,8,28], index: 0, kind: input, shape index: {}]
  %s1 = inlined_call_operand.vmem [shape: f32[140,256], index: 1, kind: input, shape index: {}]
  %s2 = inlined_call_operand.hbm [shape: f32[640,256], index: 2, kind: input, shape index: {}]
  %s3 = inlined_call_operand.vmem [shape: f32[512,50], index: 3, kind: input, shape index: {}]
  %s4 = inlined_call_operand.vmem [shape: f32[50,128], index: 4, kind: input, shape index: {}]
  %s5 = inlined_call_operand.vmem [shape: f32[4,128], index: 5, kind: input, shape index: {}]
  %s6 = inlined_call_operand.vmem [shape: f32[8,128], index: 6, kind: output, shape index: {}]
  %s7 = sld [smem:[#allocation0]]
  $region38: #{forward.1} parent=0
    _
  %s9 = ssub.s32 1, %s7
  %s10 = scalar_select 0, %s9, %s7
  $region1: #{forward.1} parent=0
    #allocation2 [shape = 'u8[655360]{0}', space=vmem, size = 0xa0000, scoped, tag = 'input window, operand 2, single buffered']
    #allocation3 [shape = 's32[1]{0}', space=sflag, size = 0x4, scoped, tag = 'scoped memory for forward.1']
    %11 = vsyncpa [#allocation3], 0
    // Predicated region
    $region2: #{forward.1} parent=1 // pred_check
      _
    $region3: #{forward.1} parent=1 // pred_check_branch
      %13 = sbr.rel (0) target = $region5
    $region4: #{forward.1} parent=1 // pred_region
      _
    $region5: #{forward.1} parent=1 // pred_fallthru
      _
    // Predicated region
    $region6: #{forward.1} parent=1 // pred_check
      _
    $region7: #{forward.1} parent=1 // pred_check_branch
      %15 = sbr.rel (0) target = $region9
    $region8: #{forward.1} parent=1 // pred_region
      _
    $region9: #{forward.1} parent=1 // pred_fallthru
      _
    // Predicated region
    $region10: #{forward.1} parent=1 // pred_check
      _
    $region11: #{forward.1} parent=1 // pred_check_branch
      %17 = sbr.rel (0) target = $region13
    $region12: #{forward.1} parent=1 // pred_region
      %s19 = ssub.s32 20480, 20480
      %20 = vsyncadd [#allocation3], %s19
      %s21 = sshll.u32 [#allocation2], 4
      %s22 = int_to_ptr.vmem [resolvable:$true] %s21
      %27 = dma.hbm_to_vmem [thread:$0]  %s2, 20480, %s22, [#allocation3], 256, 256, 16
    $region13: #{forward.1} parent=1 // pred_fallthru
      _
    // Predicated region
    $region14: #{forward.1} parent=1 // pred_check
      _
    $region15: #{forward.1} parent=1 // pred_check_branch
      %29 = sbr.rel (0) target = $region17
    $region16: #{forward.1} parent=1 // pred_region
      _
    $region17: #{forward.1} parent=1 // pred_fallthru
      _
    // Predicated region
    $region18: #{forward.1} parent=1 // pred_check
      _
    $region19: #{forward.1} parent=1 // pred_check_branch
      %31 = sbr.rel (0) target = $region21
    $region20: #{forward.1} parent=1 // pred_region
      _
    $region21: #{forward.1} parent=1 // pred_fallthru
      _
    // Predicated region
    $region22: #{forward.1} parent=1 // pred_check
      _
    $region23: #{forward.1} parent=1 // pred_check_branch
      %33 = sbr.rel (0) target = $region25
    $region24: #{forward.1} parent=1 // pred_region
      _
    $region25: #{forward.1} parent=1 // pred_fallthru
      _
    // Predicated region
    $region26: #{forward.1} parent=1 // pred_check
      _
    $region27: #{forward.1} parent=1 // pred_check_branch
      %35 = sbr.rel (0) target = $region29
    $region28: #{forward.1} parent=1 // pred_region
      %36 = dma.done [#allocation3], 20480
    $region29: #{forward.1} parent=1 // pred_fallthru
      _
    %v37 = vld [vmem:[%s0] sm:$0xff]
    %v38 = vld [vmem:[%s0 + $0x8] sm:$0xff]
    %v39 = vld [vmem:[%s0 + $0x10] sm:$0xff]
    %v40 = vld [vmem:[%s0 + $0x18] sm:$0xff]
    %v41 = vld [vmem:[%s0 + $0x20] sm:$0xff]
    %v42 = vld [vmem:[%s0 + $0x28] sm:$0xff]
    %v43 = vld [vmem:[%s0 + $0x30] sm:$0xff]
    %v44 = vld [vmem:[%s0 + $0x38] sm:$0xff]
    %v45 = vld [vmem:[%s0 + $0x40] sm:$0xff]
    %v46 = vld [vmem:[%s0 + $0x48] sm:$0xff]
    %v47 = vld [vmem:[%s0 + $0x50] sm:$0xff]
    %v48 = vld [vmem:[%s0 + $0x58] sm:$0xff]
    %v49 = vld [vmem:[%s0 + $0x60] sm:$0xff]
    %v50 = vld [vmem:[%s0 + $0x68] sm:$0xff]
    %v51 = vld [vmem:[%s0 + $0x70] sm:$0xff]
    %v52 = vld [vmem:[%s0 + $0x78] sm:$0xff]
    %v53 = vld [vmem:[%s0 + $0x80] sm:$0xff]
    %v54 = vld [vmem:[%s0 + $0x88] sm:$0xff]
    %v55 = vld [vmem:[%s0 + $0x90] sm:$0xff]
    %v56 = vld [vmem:[%s0 + $0x98] sm:$0xff]
    %v57 = vld [vmem:[%s0 + $0xa0] sm:$0xff]
    %v58 = vld [vmem:[%s0 + $0xa8] sm:$0xff]
    %v59 = vld [vmem:[%s0 + $0xb0] sm:$0xff]
    %v60 = vld [vmem:[%s0 + $0xb8] sm:$0xff]
    %v61 = vld [vmem:[%s0 + $0xc0] sm:$0xff]
    %v62 = vld [vmem:[%s0 + $0xc8] sm:$0xff]
    %v63 = vld [vmem:[%s0 + $0xd0] sm:$0xff]
    %v64 = vld [vmem:[%s0 + $0xd8] sm:$0xff]
    %v65 = vld [vmem:[%s5] sm:$0xf]
    %90 = vrot.lane.b32.xlu0 %v38, 28
    %v91 = vpop.permute.xlu0 %90
    %92 = vrot.lane.b32.xlu0 %v39, 28
    %v93 = vpop.permute.xlu0 %92
    %94 = vrot.lane.b32.xlu0 %v40, 28
    %v95 = vpop.permute.xlu0 %94
    %96 = vrot.lane.b32.xlu0 %v41, 28
    %v97 = vpop.permute.xlu0 %96
    %98 = vrot.lane.b32.xlu0 %v42, 28
    %v99 = vpop.permute.xlu0 %98
    %100 = vrot.lane.b32.xlu0 %v43, 28
    %v101 = vpop.permute.xlu0 %100
    %102 = vrot.lane.b32.xlu0 %v44, 28
    %v103 = vpop.permute.xlu0 %102
    %104 = vrot.lane.b32.xlu0 %v45, 28
    %v105 = vpop.permute.xlu0 %104
    %106 = vrot.lane.b32.xlu0 %v46, 28
    %v107 = vpop.permute.xlu0 %106
    %108 = vrot.lane.b32.xlu0 %v47, 28
    %v109 = vpop.permute.xlu0 %108
    %110 = vrot.lane.b32.xlu0 %v48, 28
    %v111 = vpop.permute.xlu0 %110
    %112 = vrot.lane.b32.xlu0 %v49, 28
    %v113 = vpop.permute.xlu0 %112
    %114 = vrot.lane.b32.xlu0 %v50, 28
    %v115 = vpop.permute.xlu0 %114
    %116 = vrot.lane.b32.xlu0 %v51, 28
    %v117 = vpop.permute.xlu0 %116
    %118 = vrot.lane.b32.xlu0 %v52, 28
    %v119 = vpop.permute.xlu0 %118
    %120 = vrot.lane.b32.xlu0 %v53, 28
    %v121 = vpop.permute.xlu0 %120
    %122 = vrot.lane.b32.xlu0 %v54, 28
    %v123 = vpop.permute.xlu0 %122
    %124 = vrot.lane.b32.xlu0 %v55, 28
    %v125 = vpop.permute.xlu0 %124
    %126 = vrot.lane.b32.xlu0 %v56, 28
    %v127 = vpop.permute.xlu0 %126
    %128 = vrot.lane.b32.xlu0 %v57, 28
    %v129 = vpop.permute.xlu0 %128
    %130 = vrot.lane.b32.xlu0 %v58, 28
    %v131 = vpop.permute.xlu0 %130
    %132 = vrot.lane.b32.xlu0 %v59, 28
    %v133 = vpop.permute.xlu0 %132
    %134 = vrot.lane.b32.xlu0 %v60, 28
    %v135 = vpop.permute.xlu0 %134
    %136 = vrot.lane.b32.xlu0 %v61, 28
    %v137 = vpop.permute.xlu0 %136
    %163 = vrot.lane.b32.xlu0 %v39, 56
    %v164 = vpop.permute.xlu0 %163
    %165 = vrot.lane.b32.xlu0 %v40, 56
    %v166 = vpop.permute.xlu0 %165
    %167 = vrot.lane.b32.xlu0 %v41, 56
    %v168 = vpop.permute.xlu0 %167
    %169 = vrot.lane.b32.xlu0 %v42, 56
    %v170 = vpop.permute.xlu0 %169
    %171 = vrot.lane.b32.xlu0 %v43, 56
    %v172 = vpop.permute.xlu0 %171
    %173 = vrot.lane.b32.xlu0 %v44, 56
    %v174 = vpop.permute.xlu0 %173
    %175 = vrot.lane.b32.xlu0 %v45, 56
    %v176 = vpop.permute.xlu0 %175
    %177 = vrot.lane.b32.xlu0 %v46, 56
    %v178 = vpop.permute.xlu0 %177
    %179 = vrot.lane.b32.xlu0 %v47, 56
    %v180 = vpop.permute.xlu0 %179
    %181 = vrot.lane.b32.xlu0 %v48, 56
    %v182 = vpop.permute.xlu0 %181
    %183 = vrot.lane.b32.xlu0 %v49, 56
    %v184 = vpop.permute.xlu0 %183
    %185 = vrot.lane.b32.xlu0 %v50, 56
    %v186 = vpop.permute.xlu0 %185
    %187 = vrot.lane.b32.xlu0 %v51, 56
    %v188 = vpop.permute.xlu0 %187
    %189 = vrot.lane.b32.xlu0 %v52, 56
    %v190 = vpop.permute.xlu0 %189
    %191 = vrot.lane.b32.xlu0 %v53, 56
    %v192 = vpop.permute.xlu0 %191
    %193 = vrot.lane.b32.xlu0 %v54, 56
    %v194 = vpop.permute.xlu0 %193
    %195 = vrot.lane.b32.xlu0 %v55, 56
    %v196 = vpop.permute.xlu0 %195
    %197 = vrot.lane.b32.xlu0 %v56, 56
    %v198 = vpop.permute.xlu0 %197
    %199 = vrot.lane.b32.xlu0 %v57, 56
    %v200 = vpop.permute.xlu0 %199
    %201 = vrot.lane.b32.xlu0 %v58, 56
    %v202 = vpop.permute.xlu0 %201
    %203 = vrot.lane.b32.xlu0 %v59, 56
    %v204 = vpop.permute.xlu0 %203
    %205 = vrot.lane.b32.xlu0 %v60, 56
    %v206 = vpop.permute.xlu0 %205
    %207 = vrot.lane.b32.xlu0 %v61, 56
    %v208 = vpop.permute.xlu0 %207
    %209 = vrot.lane.b32.xlu0 %v62, 56
    %v210 = vpop.permute.xlu0 %209
    %236 = vrot.lane.b32.xlu0 %v40, 84
    %v237 = vpop.permute.xlu0 %236
    %238 = vrot.lane.b32.xlu0 %v41, 84
    %v239 = vpop.permute.xlu0 %238
    %240 = vrot.lane.b32.xlu0 %v42, 84
    %v241 = vpop.permute.xlu0 %240
    %242 = vrot.lane.b32.xlu0 %v43, 84
    %v243 = vpop.permute.xlu0 %242
    %244 = vrot.lane.b32.xlu0 %v44, 84
    %v245 = vpop.permute.xlu0 %244
    %246 = vrot.lane.b32.xlu0 %v45, 84
    %v247 = vpop.permute.xlu0 %246
    %248 = vrot.lane.b32.xlu0 %v46, 84
    %v249 = vpop.permute.xlu0 %248
    %250 = vrot.lane.b32.xlu0 %v47, 84
    %v251 = vpop.permute.xlu0 %250
    %252 = vrot.lane.b32.xlu0 %v48, 84
    %v253 = vpop.permute.xlu0 %252
    %254 = vrot.lane.b32.xlu0 %v49, 84
    %v255 = vpop.permute.xlu0 %254
    %256 = vrot.lane.b32.xlu0 %v50, 84
    %v257 = vpop.permute.xlu0 %256
    %258 = vrot.lane.b32.xlu0 %v51, 84
    %v259 = vpop.permute.xlu0 %258
    %260 = vrot.lane.b32.xlu0 %v52, 84
    %v261 = vpop.permute.xlu0 %260
    %262 = vrot.lane.b32.xlu0 %v53, 84
    %v263 = vpop.permute.xlu0 %262
    %264 = vrot.lane.b32.xlu0 %v54, 84
    %v265 = vpop.permute.xlu0 %264
    %266 = vrot.lane.b32.xlu0 %v55, 84
    %v267 = vpop.permute.xlu0 %266
    %268 = vrot.lane.b32.xlu0 %v56, 84
    %v269 = vpop.permute.xlu0 %268
    %270 = vrot.lane.b32.xlu0 %v57, 84
    %v271 = vpop.permute.xlu0 %270
    %272 = vrot.lane.b32.xlu0 %v58, 84
    %v273 = vpop.permute.xlu0 %272
    %274 = vrot.lane.b32.xlu0 %v59, 84
    %v275 = vpop.permute.xlu0 %274
    %276 = vrot.lane.b32.xlu0 %v60, 84
    %v277 = vpop.permute.xlu0 %276
    %278 = vrot.lane.b32.xlu0 %v61, 84
    %v279 = vpop.permute.xlu0 %278
    %280 = vrot.lane.b32.xlu0 %v62, 84
    %v281 = vpop.permute.xlu0 %280
    %282 = vrot.lane.b32.xlu0 %v63, 84
    %v283 = vpop.permute.xlu0 %282
    %309 = vrot.lane.b32.xlu0 %v41, 112
    %v310 = vpop.permute.xlu0 %309
    %311 = vrot.lane.b32.xlu0 %v42, 112
    %v312 = vpop.permute.xlu0 %311
    %313 = vrot.lane.b32.xlu0 %v43, 112
    %v314 = vpop.permute.xlu0 %313
    %315 = vrot.lane.b32.xlu0 %v44, 112
    %v316 = vpop.permute.xlu0 %315
    %317 = vrot.lane.b32.xlu0 %v45, 112
    %v318 = vpop.permute.xlu0 %317
    %319 = vrot.lane.b32.xlu0 %v46, 112
    %v320 = vpop.permute.xlu0 %319
    %321 = vrot.lane.b32.xlu0 %v47, 112
    %v322 = vpop.permute.xlu0 %321
    %323 = vrot.lane.b32.xlu0 %v48, 112
    %v324 = vpop.permute.xlu0 %323
    %325 = vrot.lane.b32.xlu0 %v49, 112
    %v326 = vpop.permute.xlu0 %325
    %327 = vrot.lane.b32.xlu0 %v50, 112
    %v328 = vpop.permute.xlu0 %327
    %329 = vrot.lane.b32.xlu0 %v51, 112
    %v330 = vpop.permute.xlu0 %329
    %331 = vrot.lane.b32.xlu0 %v52, 112
    %v332 = vpop.permute.xlu0 %331
    %333 = vrot.lane.b32.xlu0 %v53, 112
    %v334 = vpop.permute.xlu0 %333
    %335 = vrot.lane.b32.xlu0 %v54, 112
    %v336 = vpop.permute.xlu0 %335
    %337 = vrot.lane.b32.xlu0 %v55, 112
    %v338 = vpop.permute.xlu0 %337
    %339 = vrot.lane.b32.xlu0 %v56, 112
    %v340 = vpop.permute.xlu0 %339
    %341 = vrot.lane.b32.xlu0 %v57, 112
    %v342 = vpop.permute.xlu0 %341
    %343 = vrot.lane.b32.xlu0 %v58, 112
    %v344 = vpop.permute.xlu0 %343
    %345 = vrot.lane.b32.xlu0 %v59, 112
    %v346 = vpop.permute.xlu0 %345
    %347 = vrot.lane.b32.xlu0 %v60, 112
    %v348 = vpop.permute.xlu0 %347
    %349 = vrot.lane.b32.xlu0 %v61, 112
    %v350 = vpop.permute.xlu0 %349
    %351 = vrot.lane.b32.xlu0 %v62, 112
    %v352 = vpop.permute.xlu0 %351
    %353 = vrot.lane.b32.xlu0 %v63, 112
    %v354 = vpop.permute.xlu0 %353
    %355 = vrot.lane.b32.xlu0 %v64, 112
    %v356 = vpop.permute.xlu0 %355
    %vm381 = vcmask 228352
    %v382 = vsel %vm381, %v37, %v91
    %v383 = vsel %vm381, %v38, %v93
    %v384 = vsel %vm381, %v39, %v95
    %v385 = vsel %vm381, %v40, %v97
    %v386 = vsel %vm381, %v41, %v99
    %v387 = vsel %vm381, %v42, %v101
    %v388 = vsel %vm381, %v43, %v103
    %v389 = vsel %vm381, %v44, %v105
    %v390 = vsel %vm381, %v45, %v107
    %v391 = vsel %vm381, %v46, %v109
    %v392 = vsel %vm381, %v47, %v111
    %v393 = vsel %vm381, %v48, %v113
    %v394 = vsel %vm381, %v49, %v115
    %v395 = vsel %vm381, %v50, %v117
    %v396 = vsel %vm381, %v51, %v119
    %v397 = vsel %vm381, %v52, %v121
    %v398 = vsel %vm381, %v53, %v123
    %v399 = vsel %vm381, %v54, %v125
    %v400 = vsel %vm381, %v55, %v127
    %v401 = vsel %vm381, %v56, %v129
    %v402 = vsel %vm381, %v57, %v131
    %v403 = vsel %vm381, %v58, %v133
    %v404 = vsel %vm381, %v59, %v135
    %v405 = vsel %vm381, %v60, %v137
    %vm406 = vcmask 457728
    %v407 = vsel %vm406, %v382, %v164
    %v408 = vsel %vm406, %v383, %v166
    %v409 = vsel %vm406, %v384, %v168
    %v410 = vsel %vm406, %v385, %v170
    %v411 = vsel %vm406, %v386, %v172
    %v412 = vsel %vm406, %v387, %v174
    %v413 = vsel %vm406, %v388, %v176
    %v414 = vsel %vm406, %v389, %v178
    %v415 = vsel %vm406, %v390, %v180
    %v416 = vsel %vm406, %v391, %v182
    %v417 = vsel %vm406, %v392, %v184
    %v418 = vsel %vm406, %v393, %v186
    %v419 = vsel %vm406, %v394, %v188
    %v420 = vsel %vm406, %v395, %v190
    %v421 = vsel %vm406, %v396, %v192
    %v422 = vsel %vm406, %v397, %v194
    %v423 = vsel %vm406, %v398, %v196
    %v424 = vsel %vm406, %v399, %v198
    %v425 = vsel %vm406, %v400, %v200
    %v426 = vsel %vm406, %v401, %v202
    %v427 = vsel %vm406, %v402, %v204
    %v428 = vsel %vm406, %v403, %v206
    %v429 = vsel %vm406, %v404, %v208
    %v430 = vsel %vm406, %v405, %v210
    %vm431 = vcmask 687104
    %v432 = vsel %vm431, %v407, %v237
    %v433 = vsel %vm431, %v408, %v239
    %v434 = vsel %vm431, %v409, %v241
    %v435 = vsel %vm431, %v410, %v243
    %v436 = vsel %vm431, %v411, %v245
    %v437 = vsel %vm431, %v412, %v247
    %v438 = vsel %vm431, %v413, %v249
    %v439 = vsel %vm431, %v414, %v251
    %v440 = vsel %vm431, %v415, %v253
    %v441 = vsel %vm431, %v416, %v255
    %v442 = vsel %vm431, %v417, %v257
    %v443 = vsel %vm431, %v418, %v259
    %v444 = vsel %vm431, %v419, %v261
    %v445 = vsel %vm431, %v420, %v263
    %v446 = vsel %vm431, %v421, %v265
    %v447 = vsel %vm431, %v422, %v267
    %v448 = vsel %vm431, %v423, %v269
    %v449 = vsel %vm431, %v424, %v271
    %v450 = vsel %vm431, %v425, %v273
    %v451 = vsel %vm431, %v426, %v275
    %v452 = vsel %vm431, %v427, %v277
    %v453 = vsel %vm431, %v428, %v279
    %v454 = vsel %vm431, %v429, %v281
    %v455 = vsel %vm431, %v430, %v283
    %vm456 = vcmask 916480
    %v457 = vsel %vm456, %v432, %v310
    %v458 = vsel %vm456, %v433, %v312
    %v459 = vsel %vm456, %v434, %v314
    %v460 = vsel %vm456, %v435, %v316
    %v461 = vsel %vm456, %v436, %v318
    %v462 = vsel %vm456, %v437, %v320
    %v463 = vsel %vm456, %v438, %v322
    %v464 = vsel %vm456, %v439, %v324
    %v465 = vsel %vm456, %v440, %v326
    %v466 = vsel %vm456, %v441, %v328
    %v467 = vsel %vm456, %v442, %v330
    %v468 = vsel %vm456, %v443, %v332
    %v469 = vsel %vm456, %v444, %v334
    %v470 = vsel %vm456, %v445, %v336
    %v471 = vsel %vm456, %v446, %v338
    %v472 = vsel %vm456, %v447, %v340
    %v473 = vsel %vm456, %v448, %v342
    %v474 = vsel %vm456, %v449, %v344
    %v475 = vsel %vm456, %v450, %v346
    %v476 = vsel %vm456, %v451, %v348
    %v477 = vsel %vm456, %v452, %v350
    %v478 = vsel %vm456, %v453, %v352
    %v479 = vsel %vm456, %v454, %v354
    %v480 = vsel %vm456, %v455, %v356
    %v481 = vld [vmem:[%s1] sm:$0xff]
    %v482 = vld [vmem:[%s1 + $0x8] sm:$0xff]
    %v483 = vld [vmem:[%s1 + $0x10] sm:$0xff]
    %v484 = vld [vmem:[%s1 + $0x18] sm:$0xff]
    %v485 = vld [vmem:[%s1 + $0x20] sm:$0xff]
    %v486 = vld [vmem:[%s1 + $0x28] sm:$0xff]
    %v487 = vld [vmem:[%s1 + $0x30] sm:$0xff]
    %v488 = vld [vmem:[%s1 + $0x38] sm:$0xff]
    %v489 = vld [vmem:[%s1 + $0x40] sm:$0xff]
    %v490 = vld [vmem:[%s1 + $0x48] sm:$0xff]
    %v491 = vld [vmem:[%s1 + $0x50] sm:$0xff]
    %v492 = vld [vmem:[%s1 + $0x58] sm:$0xff]
    %v493 = vld [vmem:[%s1 + $0x60] sm:$0xff]
    %v494 = vld [vmem:[%s1 + $0x68] sm:$0xff]
    %v495 = vld [vmem:[%s1 + $0x70] sm:$0xff]
    %v496 = vld [vmem:[%s1 + $0x78] sm:$0xff]
    %v497 = vld [vmem:[%s1 + $0x80] sm:$0xff]
    %v498 = vld [vmem:[%s1 + $0x88] sm:$0xff]
    %v499 = vld [vmem:[%s1 + $0x90] sm:$0xff]
    %v500 = vld [vmem:[%s1 + $0x98] sm:$0xff]
    %v501 = vld [vmem:[%s1 + $0xa0] sm:$0xff]
    %v502 = vld [vmem:[%s1 + $0xa8] sm:$0xff]
    %v503 = vld [vmem:[%s1 + $0xb0] sm:$0xff]
    %v504 = vld [vmem:[%s1 + $0xb8] sm:$0xff]
    %v505 = vld [vmem:[%s1 + $0xc0] sm:$0xff]
    %v506 = vld [vmem:[%s1 + $0xc8] sm:$0xff]
    %v507 = vld [vmem:[%s1 + $0xd0] sm:$0xff]
    %v508 = vld [vmem:[%s1 + $0xd8] sm:$0xff]
    %v509 = vld [vmem:[%s1 + $0xe0] sm:$0xff]
    %v510 = vld [vmem:[%s1 + $0xe8] sm:$0xff]
    %v511 = vld [vmem:[%s1 + $0xf0] sm:$0xff]
    %v512 = vld [vmem:[%s1 + $0xf8] sm:$0xff]
    %v513 = vld [vmem:[%s1 + $0x100] sm:$0xff]
    %v514 = vld [vmem:[%s1 + $0x108] sm:$0xff]
    %v515 = vld [vmem:[%s1 + $0x110] sm:$0xf]
    %v516 = vld [vmem:[%s1 + $0x118] sm:$0xf]
    %vm517 = vcmask 97280
    %v518 = vsel %vm517, %v310, 0
    %v520 = vsel %vm517, %v312, 0
    %v522 = vsel %vm517, %v314, 0
    %v524 = vsel %vm517, %v316, 0
    %v526 = vsel %vm517, %v318, 0
    %v528 = vsel %vm517, %v320, 0
    %v530 = vsel %vm517, %v322, 0
    %v532 = vsel %vm517, %v324, 0
    %v534 = vsel %vm517, %v326, 0
    %v536 = vsel %vm517, %v328, 0
    %v538 = vsel %vm517, %v330, 0
    %v540 = vsel %vm517, %v332, 0
    %v542 = vsel %vm517, %v334, 0
    %v544 = vsel %vm517, %v336, 0
    %v546 = vsel %vm517, %v338, 0
    %v548 = vsel %vm517, %v340, 0
    %v550 = vsel %vm517, %v342, 0
    %v552 = vsel %vm517, %v344, 0
    %v554 = vsel %vm517, %v346, 0
    %v556 = vsel %vm517, %v348, 0
    %v558 = vsel %vm517, %v350, 0
    %v560 = vsel %vm517, %v352, 0
    %v562 = vsel %vm517, %v354, 0
    %v564 = vsel %vm517, %v356, 0
    %vm566 = vcmask 1043456
    %v568 = vsel %vm566, %v515, 0
    %v571 = vsel %vm566, %v516, 0
    %573 = vmatprep.subr.mxu0 %v482
    %574 = vmatpush1.msra.mxu0 %v481
    %575 = vmatprep.subr.mxu0 %v484
    %576 = vmatpush1.msra.mxu0 %v483
    %577 = vmatprep.subr.mxu0 %v486
    %578 = vmatpush1.msra.mxu0 %v485
    %579 = vmatprep.subr.mxu0 %v488
    %580 = vmatpush1.msra.mxu0 %v487
    %581 = vmatprep.subr.mxu0 %v490
    %582 = vmatpush1.msra.mxu0 %v489
    %583 = vmatprep.subr.mxu0 %v492
    %584 = vmatpush1.msra.mxu0 %v491
    %585 = vmatprep.subr.mxu0 %v494
    %586 = vmatpush1.msra.mxu0 %v493
    %587 = vmatprep.subr.mxu0 %v496
    %588 = vmatpush1.msra.mxu0 %v495
    %589 = vmatprep.subr.mxu0 %v498
    %590 = vmatpush1.msra.mxu0 %v497
    %591 = vmatprep.subr.mxu0 %v500
    %592 = vmatpush1.msra.mxu0 %v499
    %593 = vmatprep.subr.mxu0 %v502
    %594 = vmatpush1.msra.mxu0 %v501
    %595 = vmatprep.subr.mxu0 %v504
    %596 = vmatpush1.msra.mxu0 %v503
    %597 = vmatprep.subr.mxu0 %v506
    %598 = vmatpush1.msra.mxu0 %v505
    %599 = vmatprep.subr.mxu0 %v508
    %600 = vmatpush1.msra.mxu0 %v507
    %601 = vmatprep.subr.mxu0 %v510
    %602 = vmatpush1.msra.mxu0 %v509
    %603 = vmatprep.subr.mxu0 %v512
    %604 = vmatpush1.msra.mxu0 %v511
    %605 = vmatprep.subr.mxu0 %v514
    %606 = vmatpush1.msra.mxu0 %v513
    %607 = vmatprep.subr.mxu0 %v571
    %608 = vmatpush1.msra.mxu0 %v568
    %609 = vmatprep.subr.mxu0 0.0
    %610 = vmatpush1.msra.mxu0 0.0
    %611 = vmatprep.subr.mxu0 0.0
    %612 = vmatpush1.msra.mxu0 0.0
    %613 = vmatprep.subr.mxu0 0.0
    %614 = vmatpush1.msra.mxu0 0.0
    %615 = vmatprep.subr.mxu0 0.0
    %616 = vmatpush1.msra.mxu0 0.0
    %617 = vmatprep.subr.mxu0 0.0
    %618 = vmatpush1.msra.mxu0 0.0
    %619 = vmatprep.subr.mxu0 0.0
    %620 = vmatpush1.msra.mxu0 0.0
    %621 = vmatprep.subr.mxu0 0.0
    %622 = vmatpush1.msra.mxu0 0.0
    %623 = vmatprep.subr.mxu0 0.0
    %624 = vmatpush1.msra.mxu0 0.0
    %625 = vmatprep.subr.mxu0 0.0
    %626 = vmatpush1.msra.mxu0 0.0
    %627 = vmatprep.subr.mxu0 0.0
    %628 = vmatpush1.msra.mxu0 0.0
    %629 = vmatprep.subr.mxu0 0.0
    %630 = vmatpush1.msra.mxu0 0.0
    %631 = vmatprep.subr.mxu0 0.0
    %632 = vmatpush1.msra.mxu0 0.0
    %633 = vmatprep.subr.mxu0 0.0
    %634 = vmatpush1.msra.mxu0 0.0
    %635 = vmatprep.subr.mxu0 0.0
    %636 = vmatpush1.msra.mxu0 0.0
    %637 = vmatprep.mubr.f32.mxu0 %v518
    %638 = vmatmul.mubr.f32.gmra.mrb[0].mxu0 %v457
    %v639 = vpop.f32.mrb[0].mxu0
    %v640 = vadd.f32 0.0, %v639
    %v641 = vpop.f32.mrb[0].mxu0
    %v642 = vadd.f32 0.0, %v641
    %643 = vmatprep.mubr.f32.mxu0 %v520
    %644 = vmatmul.mubr.f32.gmra.mrb[0].mxu0 %v458
    %v645 = vpop.f32.mrb[0].mxu0
    %v646 = vadd.f32 0.0, %v645
    %v647 = vpop.f32.mrb[0].mxu0
    %v648 = vadd.f32 0.0, %v647
    %649 = vmatprep.mubr.f32.mxu0 %v522
    %650 = vmatmul.mubr.f32.gmra.mrb[0].mxu0 %v459
    %v651 = vpop.f32.mrb[0].mxu0
    %v652 = vadd.f32 0.0, %v651
    %v653 = vpop.f32.mrb[0].mxu0
    %v654 = vadd.f32 0.0, %v653
    %655 = vmatprep.mubr.f32.mxu0 %v524
    %656 = vmatmul.mubr.f32.gmra.mrb[0].mxu0 %v460
    %v657 = vpop.f32.mrb[0].mxu0
    %v658 = vadd.f32 0.0, %v657
    %v659 = vpop.f32.mrb[0].mxu0
    %v660 = vadd.f32 0.0, %v659
    %661 = vmatprep.mubr.f32.mxu0 %v526
    %662 = vmatmul.mubr.f32.gmra.mrb[0].mxu0 %v461
    %v663 = vpop.f32.mrb[0].mxu0
    %v664 = vadd.f32 0.0, %v663
    %v665 = vpop.f32.mrb[0].mxu0
    %v666 = vadd.f32 0.0, %v665
    %667 = vmatprep.mubr.f32.mxu0 %v528
    %668 = vmatmul.mubr.f32.gmra.mrb[0].mxu0 %v462
    %v669 = vpop.f32.mrb[0].mxu0
    %v670 = vadd.f32 0.0, %v669
    %v671 = vpop.f32.mrb[0].mxu0
    %v672 = vadd.f32 0.0, %v671
    %673 = vmatprep.mubr.f32.mxu0 %v530
    %674 = vmatmul.mubr.f32.gmra.mrb[0].mxu0 %v463
    %v675 = vpop.f32.mrb[0].mxu0
    %v676 = vadd.f32 0.0, %v675
    %v677 = vpop.f32.mrb[0].mxu0
    %v678 = vadd.f32 0.0, %v677
    %679 = vmatprep.mubr.f32.mxu0 %v532
    %680 = vmatmul.mubr.f32.gmra.mrb[0].mxu0 %v464
    %v681 = vpop.f32.mrb[0].mxu0
    %v682 = vadd.f32 0.0, %v681
    %v683 = vpop.f32.mrb[0].mxu0
    %v684 = vadd.f32 0.0, %v683
    %685 = vmatprep.mubr.f32.mxu0 %v534
    %686 = vmatmul.mubr.f32.gmra.mrb[0].mxu0 %v465
    %v687 = vpop.f32.mrb[0].mxu0
    %v688 = vadd.f32 0.0, %v687
    %v689 = vpop.f32.mrb[0].mxu0
    %v690 = vadd.f32 0.0, %v689
    %691 = vmatprep.mubr.f32.mxu0 %v536
    %692 = vmatmul.mubr.f32.gmra.mrb[0].mxu0 %v466
    %v693 = vpop.f32.mrb[0].mxu0
    %v694 = vadd.f32 0.0, %v693
    %v695 = vpop.f32.mrb[0].mxu0
    %v696 = vadd.f32 0.0, %v695
    %697 = vmatprep.mubr.f32.mxu0 %v538
    %698 = vmatmul.mubr.f32.gmra.mrb[0].mxu0 %v467
    %v699 = vpop.f32.mrb[0].mxu0
    %v700 = vadd.f32 0.0, %v699
    %v701 = vpop.f32.mrb[0].mxu0
    %v702 = vadd.f32 0.0, %v701
    %703 = vmatprep.mubr.f32.mxu0 %v540
    %704 = vmatmul.mubr.f32.gmra.mrb[0].mxu0 %v468
    %v705 = vpop.f32.mrb[0].mxu0
    %v706 = vadd.f32 0.0, %v705
    %v707 = vpop.f32.mrb[0].mxu0
    %v708 = vadd.f32 0.0, %v707
    %709 = vmatprep.mubr.f32.mxu0 %v542
    %710 = vmatmul.mubr.f32.gmra.mrb[0].mxu0 %v469
    %v711 = vpop.f32.mrb[0].mxu0
    %v712 = vadd.f32 0.0, %v711
    %v713 = vpop.f32.mrb[0].mxu0
    %v714 = vadd.f32 0.0, %v713
    %715 = vmatprep.mubr.f32.mxu0 %v544
    %716 = vmatmul.mubr.f32.gmra.mrb[0].mxu0 %v470
    %v717 = vpop.f32.mrb[0].mxu0
    %v718 = vadd.f32 0.0, %v717
    %v719 = vpop.f32.mrb[0].mxu0
    %v720 = vadd.f32 0.0, %v719
    %721 = vmatprep.mubr.f32.mxu0 %v546
    %722 = vmatmul.mubr.f32.gmra.mrb[0].mxu0 %v471
    %v723 = vpop.f32.mrb[0].mxu0
    %v724 = vadd.f32 0.0, %v723
    %v725 = vpop.f32.mrb[0].mxu0
    %v726 = vadd.f32 0.0, %v725
    %727 = vmatprep.mubr.f32.mxu0 %v548
    %728 = vmatmul.mubr.f32.gmra.mrb[0].mxu0 %v472
    %v729 = vpop.f32.mrb[0].mxu0
    %v730 = vadd.f32 0.0, %v729
    %v731 = vpop.f32.mrb[0].mxu0
    %v732 = vadd.f32 0.0, %v731
    %733 = vmatprep.mubr.f32.mxu0 %v550
    %734 = vmatmul.mubr.f32.gmra.mrb[0].mxu0 %v473
    %v735 = vpop.f32.mrb[0].mxu0
    %v736 = vadd.f32 0.0, %v735
    %v737 = vpop.f32.mrb[0].mxu0
    %v738 = vadd.f32 0.0, %v737
    %739 = vmatprep.mubr.f32.mxu0 %v552
    %740 = vmatmul.mubr.f32.gmra.mrb[0].mxu0 %v474
    %v741 = vpop.f32.mrb[0].mxu0
    %v742 = vadd.f32 0.0, %v741
    %v743 = vpop.f32.mrb[0].mxu0
    %v744 = vadd.f32 0.0, %v743
    %745 = vmatprep.mubr.f32.mxu0 %v554
    %746 = vmatmul.mubr.f32.gmra.mrb[0].mxu0 %v475
    %v747 = vpop.f32.mrb[0].mxu0
    %v748 = vadd.f32 0.0, %v747
    %v749 = vpop.f32.mrb[0].mxu0
    %v750 = vadd.f32 0.0, %v749
    %751 = vmatprep.mubr.f32.mxu0 %v556
    %752 = vmatmul.mubr.f32.gmra.mrb[0].mxu0 %v476
    %v753 = vpop.f32.mrb[0].mxu0
    %v754 = vadd.f32 0.0, %v753
    %v755 = vpop.f32.mrb[0].mxu0
    %v756 = vadd.f32 0.0, %v755
    %757 = vmatprep.mubr.f32.mxu0 %v558
    %758 = vmatmul.mubr.f32.gmra.mrb[0].mxu0 %v477
    %v759 = vpop.f32.mrb[0].mxu0
    %v760 = vadd.f32 0.0, %v759
    %v761 = vpop.f32.mrb[0].mxu0
    %v762 = vadd.f32 0.0, %v761
    %763 = vmatprep.mubr.f32.mxu0 %v560
    %764 = vmatmul.mubr.f32.gmra.mrb[0].mxu0 %v478
    %v765 = vpop.f32.mrb[0].mxu0
    %v766 = vadd.f32 0.0, %v765
    %v767 = vpop.f32.mrb[0].mxu0
    %v768 = vadd.f32 0.0, %v767
    %769 = vmatprep.mubr.f32.mxu0 %v562
    %770 = vmatmul.mubr.f32.gmra.mrb[0].mxu0 %v479
    %v771 = vpop.f32.mrb[0].mxu0
    %v772 = vadd.f32 0.0, %v771
    %v773 = vpop.f32.mrb[0].mxu0
    %v774 = vadd.f32 0.0, %v773
    %775 = vmatprep.mubr.f32.mxu0 %v564
    %776 = vmatmul.mubr.f32.gmra.mrb[0].mxu0 %v480
    %v777 = vpop.f32.mrb[0].mxu0
    %v778 = vadd.f32 0.0, %v777
    %v779 = vpop.f32.mrb[0].mxu0
    %v780 = vadd.f32 0.0, %v779
    %781 = vdwg.mxu0
    %v782 = vmax.f32 %v640, %v646
    %v783 = vmax.f32 %v642, %v648
    %v784 = vmax.f32 %v652, %v658
    %v785 = vmax.f32 %v654, %v660
    %v786 = vmax.f32 %v664, %v670
    %v787 = vmax.f32 %v666, %v672
    %v788 = vmax.f32 %v676, %v682
    %v789 = vmax.f32 %v678, %v684
    %v790 = vmax.f32 %v688, %v694
    %v791 = vmax.f32 %v690, %v696
    %v792 = vmax.f32 %v700, %v706
    %v793 = vmax.f32 %v702, %v708
    %v794 = vmax.f32 %v712, %v718
    %v795 = vmax.f32 %v714, %v720
    %v796 = vmax.f32 %v724, %v730
    %v797 = vmax.f32 %v726, %v732
    %v798 = vmax.f32 %v736, %v742
    %v799 = vmax.f32 %v738, %v744
    %v800 = vmax.f32 %v748, %v754
    %v801 = vmax.f32 %v750, %v756
    %v802 = vmax.f32 %v760, %v766
    %v803 = vmax.f32 %v762, %v768
    %v804 = vmax.f32 %v772, %v778
    %v805 = vmax.f32 %v774, %v780
    %v806 = vmax.f32 %v782, %v783
    %v807 = vmax.f32 %v784, %v785
    %v808 = vmax.f32 %v786, %v787
    %v809 = vmax.f32 %v788, %v789
    %v810 = vmax.f32 %v790, %v791
    %v811 = vmax.f32 %v792, %v793
    %v812 = vmax.f32 %v794, %v795
    %v813 = vmax.f32 %v796, %v797
    %v814 = vmax.f32 %v798, %v799
    %v815 = vmax.f32 %v800, %v801
    %v816 = vmax.f32 %v802, %v803
    %v817 = vmax.f32 %v804, %v805
    %v818 = vlaneseq
    %v819 = vshrl.u32 %v818, 7
    %v820 = vsub.s32 0, %v819
    %v821 = vrot.slane %v65, %v820
    %v822 = vadd.f32 %v806, %v821
    %v823 = vadd.f32 %v807, %v821
    %v824 = vadd.f32 %v808, %v821
    %v825 = vadd.f32 %v809, %v821
    %v826 = vadd.f32 %v810, %v821
    %v827 = vadd.f32 %v811, %v821
    %v828 = vadd.f32 %v812, %v821
    %v829 = vadd.f32 %v813, %v821
    %v830 = vadd.f32 %v814, %v821
    %v831 = vadd.f32 %v815, %v821
    %v832 = vadd.f32 %v816, %v821
    %v833 = vadd.f32 %v817, %v821
    %v834 = vmax.f32 %v822, 0.0
    %v835 = vmax.f32 %v823, 0.0
    %v836 = vmax.f32 %v824, 0.0
    %v837 = vmax.f32 %v825, 0.0
    %v838 = vmax.f32 %v826, 0.0
    %v839 = vmax.f32 %v827, 0.0
    %v840 = vmax.f32 %v828, 0.0
    %v841 = vmax.f32 %v829, 0.0
    %v842 = vmax.f32 %v830, 0.0
    %v843 = vmax.f32 %v831, 0.0
    %v844 = vmax.f32 %v832, 0.0
    %v845 = vmax.f32 %v833, 0.0
    %v846 = vld [vmem:[#allocation2] sm:$0xff]
    %v847 = vld [vmem:[#allocation2 + $0x8] sm:$0xff]
    %v848 = vld [vmem:[#allocation2 + $0x10] sm:$0xff]
    %v849 = vld [vmem:[#allocation2 + $0x18] sm:$0xff]
    %v850 = vld [vmem:[#allocation2 + $0x20] sm:$0xff]
    %v851 = vld [vmem:[#allocation2 + $0x28] sm:$0xff]
    %v852 = vld [vmem:[#allocation2 + $0x30] sm:$0xff]
    %v853 = vld [vmem:[#allocation2 + $0x38] sm:$0xff]
    %v854 = vld [vmem:[#allocation2 + $0x40] sm:$0xff]
    %v855 = vld [vmem:[#allocation2 + $0x48] sm:$0xff]
    %v856 = vld [vmem:[#allocation2 + $0x50] sm:$0xff]
    %v857 = vld [vmem:[#allocation2 + $0x58] sm:$0xff]
    %v858 = vld [vmem:[#allocation2 + $0x60] sm:$0xff]
    %v859 = vld [vmem:[#allocation2 + $0x68] sm:$0xff]
    %v860 = vld [vmem:[#allocation2 + $0x70] sm:$0xff]
    %v861 = vld [vmem:[#allocation2 + $0x78] sm:$0xff]
    %v862 = vld [vmem:[#allocation2 + $0x80] sm:$0xff]
    %v863 = vld [vmem:[#allocation2 + $0x88] sm:$0xff]
    %v864 = vld [vmem:[#allocation2 + $0x90] sm:$0xff]
    %v865 = vld [vmem:[#allocation2 + $0x98] sm:$0xff]
    %v866 = vld [vmem:[#allocation2 + $0xa0] sm:$0xff]
    %v867 = vld [vmem:[#allocation2 + $0xa8] sm:$0xff]
    %v868 = vld [vmem:[#allocation2 + $0xb0] sm:$0xff]
    %v869 = vld [vmem:[#allocation2 + $0xb8] sm:$0xff]
    %v870 = vld [vmem:[#allocation2 + $0xc0] sm:$0xff]
    %v871 = vld [vmem:[#allocation2 + $0xc8] sm:$0xff]
    %v872 = vld [vmem:[#allocation2 + $0xd0] sm:$0xff]
    %v873 = vld [vmem:[#allocation2 + $0xd8] sm:$0xff]
    %v874 = vld [vmem:[#allocation2 + $0xe0] sm:$0xff]
    %v875 = vld [vmem:[#allocation2 + $0xe8] sm:$0xff]
    %v876 = vld [vmem:[#allocation2 + $0xf0] sm:$0xff]
    %v877 = vld [vmem:[#allocation2 + $0xf8] sm:$0xff]
    %v878 = vld [vmem:[#allocation2 + $0x100] sm:$0xff]
    %v879 = vld [vmem:[#allocation2 + $0x108] sm:$0xff]
    %v880 = vld [vmem:[#allocation2 + $0x110] sm:$0xff]
    %v881 = vld [vmem:[#allocation2 + $0x118] sm:$0xff]
    %v882 = vld [vmem:[#allocation2 + $0x120] sm:$0xff]
    %v883 = vld [vmem:[#allocation2 + $0x128] sm:$0xff]
    %v884 = vld [vmem:[#allocation2 + $0x130] sm:$0xff]
    %v885 = vld [vmem:[#allocation2 + $0x138] sm:$0xff]
    %v886 = vld [vmem:[#allocation2 + $0x140] sm:$0xff]
    %v887 = vld [vmem:[#allocation2 + $0x148] sm:$0xff]
    %v888 = vld [vmem:[#allocation2 + $0x150] sm:$0xff]
    %v889 = vld [vmem:[#allocation2 + $0x158] sm:$0xff]
    %v890 = vld [vmem:[#allocation2 + $0x160] sm:$0xff]
    %v891 = vld [vmem:[#allocation2 + $0x168] sm:$0xff]
    %v892 = vld [vmem:[#allocation2 + $0x170] sm:$0xff]
    %v893 = vld [vmem:[#allocation2 + $0x178] sm:$0xff]
    %v894 = vld [vmem:[#allocation2 + $0x180] sm:$0xff]
    %v895 = vld [vmem:[#allocation2 + $0x188] sm:$0xff]
    %v896 = vld [vmem:[#allocation2 + $0x190] sm:$0xff]
    %v897 = vld [vmem:[#allocation2 + $0x198] sm:$0xff]
    %v898 = vld [vmem:[#allocation2 + $0x1a0] sm:$0xff]
    %v899 = vld [vmem:[#allocation2 + $0x1a8] sm:$0xff]
    %v900 = vld [vmem:[#allocation2 + $0x1b0] sm:$0xff]
    %v901 = vld [vmem:[#allocation2 + $0x1b8] sm:$0xff]
    %v902 = vld [vmem:[#allocation2 + $0x1c0] sm:$0xff]
    %v903 = vld [vmem:[#allocation2 + $0x1c8] sm:$0xff]
    %v904 = vld [vmem:[#allocation2 + $0x1d0] sm:$0xff]
    %v905 = vld [vmem:[#allocation2 + $0x1d8] sm:$0xff]
    %v906 = vld [vmem:[#allocation2 + $0x1e0] sm:$0xff]
    %v907 = vld [vmem:[#allocation2 + $0x1e8] sm:$0xff]
    %v908 = vld [vmem:[#allocation2 + $0x1f0] sm:$0xff]
    %v909 = vld [vmem:[#allocation2 + $0x1f8] sm:$0xff]
    %v910 = vld [vmem:[#allocation2 + $0x200] sm:$0xff]
    %v911 = vld [vmem:[#allocation2 + $0x208] sm:$0xff]
    %v912 = vld [vmem:[#allocation2 + $0x210] sm:$0xff]
    %v913 = vld [vmem:[#allocation2 + $0x218] sm:$0xff]
    %v914 = vld [vmem:[#allocation2 + $0x220] sm:$0xff]
    %v915 = vld [vmem:[#allocation2 + $0x228] sm:$0xff]
    %v916 = vld [vmem:[#allocation2 + $0x230] sm:$0xff]
    %v917 = vld [vmem:[#allocation2 + $0x238] sm:$0xff]
    %v918 = vld [vmem:[#allocation2 + $0x240] sm:$0xff]
    %v919 = vld [vmem:[#allocation2 + $0x248] sm:$0xff]
    %v920 = vld [vmem:[#allocation2 + $0x250] sm:$0xff]
    %v921 = vld [vmem:[#allocation2 + $0x258] sm:$0xff]
    %v922 = vld [vmem:[#allocation2 + $0x260] sm:$0xff]
    %v923 = vld [vmem:[#allocation2 + $0x268] sm:$0xff]
    %v924 = vld [vmem:[#allocation2 + $0x270] sm:$0xff]
    %v925 = vld [vmem:[#allocation2 + $0x278] sm:$0xff]
    %v926 = vld [vmem:[#allocation2 + $0x280] sm:$0xff]
    %v927 = vld [vmem:[#allocation2 + $0x288] sm:$0xff]
    %v928 = vld [vmem:[#allocation2 + $0x290] sm:$0xff]
    %v929 = vld [vmem:[#allocation2 + $0x298] sm:$0xff]
    %v930 = vld [vmem:[#allocation2 + $0x2a0] sm:$0xff]
    %v931 = vld [vmem:[#allocation2 + $0x2a8] sm:$0xff]
    %v932 = vld [vmem:[#allocation2 + $0x2b0] sm:$0xff]
    %v933 = vld [vmem:[#allocation2 + $0x2b8] sm:$0xff]
    %v934 = vld [vmem:[#allocation2 + $0x2c0] sm:$0xff]
    %v935 = vld [vmem:[#allocation2 + $0x2c8] sm:$0xff]
    %v936 = vld [vmem:[#allocation2 + $0x2d0] sm:$0xff]
    %v937 = vld [vmem:[#allocation2 + $0x2d8] sm:$0xff]
    %v938 = vld [vmem:[#allocation2 + $0x2e0] sm:$0xff]
    %v939 = vld [vmem:[#allocation2 + $0x2e8] sm:$0xff]
    %v940 = vld [vmem:[#allocation2 + $0x2f0] sm:$0xff]
    %v941 = vld [vmem:[#allocation2 + $0x2f8] sm:$0xff]
    %v942 = vld [vmem:[#allocation2 + $0x300] sm:$0xff]
    %v943 = vld [vmem:[#allocation2 + $0x308] sm:$0xff]
    %v944 = vld [vmem:[#allocation2 + $0x310] sm:$0xff]
    %v945 = vld [vmem:[#allocation2 + $0x318] sm:$0xff]
    %v946 = vld [vmem:[#allocation2 + $0x320] sm:$0xff]
    %v947 = vld [vmem:[#allocation2 + $0x328] sm:$0xff]
    %v948 = vld [vmem:[#allocation2 + $0x330] sm:$0xff]
    %v949 = vld [vmem:[#allocation2 + $0x338] sm:$0xff]
    %v950 = vld [vmem:[#allocation2 + $0x340] sm:$0xff]
    %v951 = vld [vmem:[#allocation2 + $0x348] sm:$0xff]
    %v952 = vld [vmem:[#allocation2 + $0x350] sm:$0xff]
    %v953 = vld [vmem:[#allocation2 + $0x358] sm:$0xff]
    %v954 = vld [vmem:[#allocation2 + $0x360] sm:$0xff]
    %v955 = vld [vmem:[#allocation2 + $0x368] sm:$0xff]
    %v956 = vld [vmem:[#allocation2 + $0x370] sm:$0xff]
    %v957 = vld [vmem:[#allocation2 + $0x378] sm:$0xff]
    %v958 = vld [vmem:[#allocation2 + $0x380] sm:$0xff]
    %v959 = vld [vmem:[#allocation2 + $0x388] sm:$0xff]
    %v960 = vld [vmem:[#allocation2 + $0x390] sm:$0xff]
    %v961 = vld [vmem:[#allocation2 + $0x398] sm:$0xff]
    %v962 = vld [vmem:[#allocation2 + $0x3a0] sm:$0xff]
    %v963 = vld [vmem:[#allocation2 + $0x3a8] sm:$0xff]
    %v964 = vld [vmem:[#allocation2 + $0x3b0] sm:$0xff]
    %v965 = vld [vmem:[#allocation2 + $0x3b8] sm:$0xff]
    %v966 = vld [vmem:[#allocation2 + $0x3c0] sm:$0xff]
    %v967 = vld [vmem:[#allocation2 + $0x3c8] sm:$0xff]
    %v968 = vld [vmem:[#allocation2 + $0x3d0] sm:$0xff]
    %v969 = vld [vmem:[#allocation2 + $0x3d8] sm:$0xff]
    %v970 = vld [vmem:[#allocation2 + $0x3e0] sm:$0xff]
    %v971 = vld [vmem:[#allocation2 + $0x3e8] sm:$0xff]
    %v972 = vld [vmem:[#allocation2 + $0x3f0] sm:$0xff]
    %v973 = vld [vmem:[#allocation2 + $0x3f8] sm:$0xff]
    %v974 = vld [vmem:[#allocation2 + $0x400] sm:$0xff]
    %v975 = vld [vmem:[#allocation2 + $0x408] sm:$0xff]
    %v976 = vld [vmem:[#allocation2 + $0x410] sm:$0xff]
    %v977 = vld [vmem:[#allocation2 + $0x418] sm:$0xff]
    %v978 = vld [vmem:[#allocation2 + $0x420] sm:$0xff]
    %v979 = vld [vmem:[#allocation2 + $0x428] sm:$0xff]
    %v980 = vld [vmem:[#allocation2 + $0x430] sm:$0xff]
    %v981 = vld [vmem:[#allocation2 + $0x438] sm:$0xff]
    %v982 = vld [vmem:[#allocation2 + $0x440] sm:$0xff]
    %v983 = vld [vmem:[#allocation2 + $0x448] sm:$0xff]
    %v984 = vld [vmem:[#allocation2 + $0x450] sm:$0xff]
    %v985 = vld [vmem:[#allocation2 + $0x458] sm:$0xff]
    %v986 = vld [vmem:[#allocation2 + $0x460] sm:$0xff]
    %v987 = vld [vmem:[#allocation2 + $0x468] sm:$0xff]
    %v988 = vld [vmem:[#allocation2 + $0x470] sm:$0xff]
    %v989 = vld [vmem:[#allocation2 + $0x478] sm:$0xff]
    %v990 = vld [vmem:[#allocation2 + $0x480] sm:$0xff]
    %v991 = vld [vmem:[#allocation2 + $0x488] sm:$0xff]
    %v992 = vld [vmem:[#allocation2 + $0x490] sm:$0xff]
    %v993 = vld [vmem:[#allocation2 + $0x498] sm:$0xff]
    %v994 = vld [vmem:[#allocation2 + $0x4a0] sm:$0xff]
    %v995 = vld [vmem:[#allocation2 + $0x4a8] sm:$0xff]
    %v996 = vld [vmem:[#allocation2 + $0x4b0] sm:$0xff]
    %v997 = vld [vmem:[#allocation2 + $0x4b8] sm:$0xff]
    %v998 = vld [vmem:[#allocation2 + $0x4c0] sm:$0xff]
    %v999 = vld [vmem:[#allocation2 + $0x4c8] sm:$0xff]
    %v1000 = vld [vmem:[#allocation2 + $0x4d0] sm:$0xff]
    %v1001 = vld [vmem:[#allocation2 + $0x4d8] sm:$0xff]
    %v1002 = vld [vmem:[#allocation2 + $0x4e0] sm:$0xff]
    %v1003 = vld [vmem:[#allocation2 + $0x4e8] sm:$0xff]
    %v1004 = vld [vmem:[#allocation2 + $0x4f0] sm:$0xff]
    %v1005 = vld [vmem:[#allocation2 + $0x4f8] sm:$0xff]
    %1006 = vmatprep.subr.mxu0 %v847
    %1007 = vmatpush1.msra.mxu0 %v846
    %1008 = vmatprep.subr.mxu0 %v849
    %1009 = vmatpush1.msra.mxu0 %v848
    %1010 = vmatprep.subr.mxu0 %v851
    %1011 = vmatpush1.msra.mxu0 %v850
    %1012 = vmatprep.subr.mxu0 %v853
    %1013 = vmatpush1.msra.mxu0 %v852
    %1014 = vmatprep.subr.mxu0 %v855
    %1015 = vmatpush1.msra.mxu0 %v854
    %1016 = vmatprep.subr.mxu0 %v857
    %1017 = vmatpush1.msra.mxu0 %v856
    %1018 = vmatprep.subr.mxu0 %v859
    %1019 = vmatpush1.msra.mxu0 %v858
    %1020 = vmatprep.subr.mxu0 %v861
    %1021 = vmatpush1.msra.mxu0 %v860
    %1022 = vmatprep.subr.mxu0 %v863
    %1023 = vmatpush1.msra.mxu0 %v862
    %1024 = vmatprep.subr.mxu0 %v865
    %1025 = vmatpush1.msra.mxu0 %v864
    %1026 = vmatprep.subr.mxu0 %v867
    %1027 = vmatpush1.msra.mxu0 %v866
    %1028 = vmatprep.subr.mxu0 %v869
    %1029 = vmatpush1.msra.mxu0 %v868
    %1030 = vmatprep.subr.mxu0 %v871
    %1031 = vmatpush1.msra.mxu0 %v870
    %1032 = vmatprep.subr.mxu0 %v873
    %1033 = vmatpush1.msra.mxu0 %v872
    %1034 = vmatprep.subr.mxu0 %v875
    %1035 = vmatpush1.msra.mxu0 %v874
    %1036 = vmatprep.subr.mxu0 %v877
    %1037 = vmatpush1.msra.mxu0 %v876
    %1038 = vmatprep.subr.mxu0 %v879
    %1039 = vmatpush1.msra.mxu0 %v878
    %1040 = vmatprep.subr.mxu0 %v881
    %1041 = vmatpush1.msra.mxu0 %v880
    %1042 = vmatprep.subr.mxu0 %v883
    %1043 = vmatpush1.msra.mxu0 %v882
    %1044 = vmatprep.subr.mxu0 %v885
    %1045 = vmatpush1.msra.mxu0 %v884
    %1046 = vmatprep.subr.mxu0 %v887
    %1047 = vmatpush1.msra.mxu0 %v886
    %1048 = vmatprep.subr.mxu0 %v889
    %1049 = vmatpush1.msra.mxu0 %v888
    %1050 = vmatprep.subr.mxu0 %v891
    %1051 = vmatpush1.msra.mxu0 %v890
    %1052 = vmatprep.subr.mxu0 %v893
    %1053 = vmatpush1.msra.mxu0 %v892
    %1054 = vmatprep.subr.mxu0 %v895
    %1055 = vmatpush1.msra.mxu0 %v894
    %1056 = vmatprep.subr.mxu0 %v897
    %1057 = vmatpush1.msra.mxu0 %v896
    %1058 = vmatprep.subr.mxu0 %v899
    %1059 = vmatpush1.msra.mxu0 %v898
    %1060 = vmatprep.subr.mxu0 %v901
    %1061 = vmatpush1.msra.mxu0 %v900
    %1062 = vmatprep.subr.mxu0 %v903
    %1063 = vmatpush1.msra.mxu0 %v902
    %1064 = vmatprep.subr.mxu0 %v905
    %1065 = vmatpush1.msra.mxu0 %v904
    %1066 = vmatprep.subr.mxu0 %v907
    %1067 = vmatpush1.msra.mxu0 %v906
    %1068 = vmatprep.subr.mxu0 %v909
    %1069 = vmatpush1.msra.mxu0 %v908
    %1070 = vmatprep.mubr.f32.mxu0 %v835
    %1071 = vmatmul.mubr.f32.gmra.mrb[0].mxu0 %v834
    %v1072 = vpop.f32.mrb[0].mxu0
    %v1073 = vadd.f32 0.0, %v1072
    %v1074 = vpop.f32.mrb[0].mxu0
    %v1075 = vadd.f32 0.0, %v1074
    %1076 = vmatprep.mubr.f32.mxu0 %v836
    %1077 = vmatmul.mubr.f32.gmra.mrb[0].mxu0 %v835
    %v1078 = vpop.f32.mrb[0].mxu0
    %v1079 = vadd.f32 0.0, %v1078
    %v1080 = vpop.f32.mrb[0].mxu0
    %v1081 = vadd.f32 0.0, %v1080
    %1082 = vmatprep.mubr.f32.mxu0 %v837
    %1083 = vmatmul.mubr.f32.gmra.mrb[0].mxu0 %v836
    %v1084 = vpop.f32.mrb[0].mxu0
    %v1085 = vadd.f32 0.0, %v1084
    %v1086 = vpop.f32.mrb[0].mxu0
    %v1087 = vadd.f32 0.0, %v1086
    %1088 = vmatprep.mubr.f32.mxu0 %v838
    %1089 = vmatmul.mubr.f32.gmra.mrb[0].mxu0 %v837
    %v1090 = vpop.f32.mrb[0].mxu0
    %v1091 = vadd.f32 0.0, %v1090
    %v1092 = vpop.f32.mrb[0].mxu0
    %v1093 = vadd.f32 0.0, %v1092
    %1094 = vmatprep.mubr.f32.mxu0 %v839
    %1095 = vmatmul.mubr.f32.gmra.mrb[0].mxu0 %v838
    %v1096 = vpop.f32.mrb[0].mxu0
    %v1097 = vadd.f32 0.0, %v1096
    %v1098 = vpop.f32.mrb[0].mxu0
    %v1099 = vadd.f32 0.0, %v1098
    %1100 = vmatprep.mubr.f32.mxu0 %v840
    %1101 = vmatmul.mubr.f32.gmra.mrb[0].mxu0 %v839
    %v1102 = vpop.f32.mrb[0].mxu0
    %v1103 = vadd.f32 0.0, %v1102
    %v1104 = vpop.f32.mrb[0].mxu0
    %v1105 = vadd.f32 0.0, %v1104
    %1106 = vmatprep.mubr.f32.mxu0 %v841
    %1107 = vmatmul.mubr.f32.gmra.mrb[0].mxu0 %v840
    %v1108 = vpop.f32.mrb[0].mxu0
    %v1109 = vadd.f32 0.0, %v1108
    %v1110 = vpop.f32.mrb[0].mxu0
    %v1111 = vadd.f32 0.0, %v1110
    %1112 = vmatprep.mubr.f32.mxu0 %v842
    %1113 = vmatmul.mubr.f32.gmra.mrb[0].mxu0 %v841
    %v1114 = vpop.f32.mrb[0].mxu0
    %v1115 = vadd.f32 0.0, %v1114
    %v1116 = vpop.f32.mrb[0].mxu0
    %v1117 = vadd.f32 0.0, %v1116
    %1118 = vdwg.mxu0
    %1119 = vmatprep.subr.mxu0 %v911
    %1120 = vmatpush1.msra.mxu0 %v910
    %1121 = vmatprep.subr.mxu0 %v913
    %1122 = vmatpush1.msra.mxu0 %v912
    %1123 = vmatprep.subr.mxu0 %v915
    %1124 = vmatpush1.msra.mxu0 %v914
    %1125 = vmatprep.subr.mxu0 %v917
    %1126 = vmatpush1.msra.mxu0 %v916
    %1127 = vmatprep.subr.mxu0 %v919
    %1128 = vmatpush1.msra.mxu0 %v918
    %1129 = vmatprep.subr.mxu0 %v921
    %1130 = vmatpush1.msra.mxu0 %v920
    %1131 = vmatprep.subr.mxu0 %v923
    %1132 = vmatpush1.msra.mxu0 %v922
    %1133 = vmatprep.subr.mxu0 %v925
    %1134 = vmatpush1.msra.mxu0 %v924
    %1135 = vmatprep.subr.mxu0 %v927
    %1136 = vmatpush1.msra.mxu0 %v926
    %1137 = vmatprep.subr.mxu0 %v929
    %1138 = vmatpush1.msra.mxu0 %v928
    %1139 = vmatprep.subr.mxu0 %v931
    %1140 = vmatpush1.msra.mxu0 %v930
    %1141 = vmatprep.subr.mxu0 %v933
    %1142 = vmatpush1.msra.mxu0 %v932
    %1143 = vmatprep.subr.mxu0 %v935
    %1144 = vmatpush1.msra.mxu0 %v934
    %1145 = vmatprep.subr.mxu0 %v937
    %1146 = vmatpush1.msra.mxu0 %v936
    %1147 = vmatprep.subr.mxu0 %v939
    %1148 = vmatpush1.msra.mxu0 %v938
    %1149 = vmatprep.subr.mxu0 %v941
    %1150 = vmatpush1.msra.mxu0 %v940
    %1151 = vmatprep.subr.mxu0 %v943
    %1152 = vmatpush1.msra.mxu0 %v942
    %1153 = vmatprep.subr.mxu0 %v945
    %1154 = vmatpush1.msra.mxu0 %v944
    %1155 = vmatprep.subr.mxu0 %v947
    %1156 = vmatpush1.msra.mxu0 %v946
    %1157 = vmatprep.subr.mxu0 %v949
    %1158 = vmatpush1.msra.mxu0 %v948
    %1159 = vmatprep.subr.mxu0 %v951
    %1160 = vmatpush1.msra.mxu0 %v950
    %1161 = vmatprep.subr.mxu0 %v953
    %1162 = vmatpush1.msra.mxu0 %v952
    %1163 = vmatprep.subr.mxu0 %v955
    %1164 = vmatpush1.msra.mxu0 %v954
    %1165 = vmatprep.subr.mxu0 %v957
    %1166 = vmatpush1.msra.mxu0 %v956
    %1167 = vmatprep.subr.mxu0 %v959
    %1168 = vmatpush1.msra.mxu0 %v958
    %1169 = vmatprep.subr.mxu0 %v961
    %1170 = vmatpush1.msra.mxu0 %v960
    %1171 = vmatprep.subr.mxu0 %v963
    %1172 = vmatpush1.msra.mxu0 %v962
    %1173 = vmatprep.subr.mxu0 %v965
    %1174 = vmatpush1.msra.mxu0 %v964
    %1175 = vmatprep.subr.mxu0 %v967
    %1176 = vmatpush1.msra.mxu0 %v966
    %1177 = vmatprep.subr.mxu0 %v969
    %1178 = vmatpush1.msra.mxu0 %v968
    %1179 = vmatprep.subr.mxu0 %v971
    %1180 = vmatpush1.msra.mxu0 %v970
    %1181 = vmatprep.subr.mxu0 %v973
    %1182 = vmatpush1.msra.mxu0 %v972
    %1183 = vmatprep.mubr.f32.mxu0 %v837
    %1184 = vmatmul.mubr.f32.gmra.mrb[0].mxu0 %v836
    %v1185 = vpop.f32.mrb[0].mxu0
    %v1186 = vadd.f32 %v1073, %v1185
    %v1187 = vpop.f32.mrb[0].mxu0
    %v1188 = vadd.f32 %v1075, %v1187
    %1189 = vmatprep.mubr.f32.mxu0 %v838
    %1190 = vmatmul.mubr.f32.gmra.mrb[0].mxu0 %v837
    %v1191 = vpop.f32.mrb[0].mxu0
    %v1192 = vadd.f32 %v1079, %v1191
    %v1193 = vpop.f32.mrb[0].mxu0
    %v1194 = vadd.f32 %v1081, %v1193
    %1195 = vmatprep.mubr.f32.mxu0 %v839
    %1196 = vmatmul.mubr.f32.gmra.mrb[0].mxu0 %v838
    %v1197 = vpop.f32.mrb[0].mxu0
    %v1198 = vadd.f32 %v1085, %v1197
    %v1199 = vpop.f32.mrb[0].mxu0
    %v1200 = vadd.f32 %v1087, %v1199
    %1201 = vmatprep.mubr.f32.mxu0 %v840
    %1202 = vmatmul.mubr.f32.gmra.mrb[0].mxu0 %v839
    %v1203 = vpop.f32.mrb[0].mxu0
    %v1204 = vadd.f32 %v1091, %v1203
    %v1205 = vpop.f32.mrb[0].mxu0
    %v1206 = vadd.f32 %v1093, %v1205
    %1207 = vmatprep.mubr.f32.mxu0 %v841
    %1208 = vmatmul.mubr.f32.gmra.mrb[0].mxu0 %v840
    %v1209 = vpop.f32.mrb[0].mxu0
    %v1210 = vadd.f32 %v1097, %v1209
    %v1211 = vpop.f32.mrb[0].mxu0
    %v1212 = vadd.f32 %v1099, %v1211
    %1213 = vmatprep.mubr.f32.mxu0 %v842
    %1214 = vmatmul.mubr.f32.gmra.mrb[0].mxu0 %v841
    %v1215 = vpop.f32.mrb[0].mxu0
    %v1216 = vadd.f32 %v1103, %v1215
    %v1217 = vpop.f32.mrb[0].mxu0
    %v1218 = vadd.f32 %v1105, %v1217
    %1219 = vmatprep.mubr.f32.mxu0 %v843
    %1220 = vmatmul.mubr.f32.gmra.mrb[0].mxu0 %v842
    %v1221 = vpop.f32.mrb[0].mxu0
    %v1222 = vadd.f32 %v1109, %v1221
    %v1223 = vpop.f32.mrb[0].mxu0
    %v1224 = vadd.f32 %v1111, %v1223
    %1225 = vmatprep.mubr.f32.mxu0 %v844
    %1226 = vmatmul.mubr.f32.gmra.mrb[0].mxu0 %v843
    %v1227 = vpop.f32.mrb[0].mxu0
    %v1228 = vadd.f32 %v1115, %v1227
    %v1229 = vpop.f32.mrb[0].mxu0
    %v1230 = vadd.f32 %v1117, %v1229
    %1231 = vdwg.mxu0
    %1232 = vmatprep.subr.mxu0 %v975
    %1233 = vmatpush1.msra.mxu0 %v974
    %1234 = vmatprep.subr.mxu0 %v977
    %1235 = vmatpush1.msra.mxu0 %v976
    %1236 = vmatprep.subr.mxu0 %v979
    %1237 = vmatpush1.msra.mxu0 %v978
    %1238 = vmatprep.subr.mxu0 %v981
    %1239 = vmatpush1.msra.mxu0 %v980
    %1240 = vmatprep.subr.mxu0 %v983
    %1241 = vmatpush1.msra.mxu0 %v982
    %1242 = vmatprep.subr.mxu0 %v985
    %1243 = vmatpush1.msra.mxu0 %v984
    %1244 = vmatprep.subr.mxu0 %v987
    %1245 = vmatpush1.msra.mxu0 %v986
    %1246 = vmatprep.subr.mxu0 %v989
    %1247 = vmatpush1.msra.mxu0 %v988
    %1248 = vmatprep.subr.mxu0 %v991
    %1249 = vmatpush1.msra.mxu0 %v990
    %1250 = vmatprep.subr.mxu0 %v993
    %1251 = vmatpush1.msra.mxu0 %v992
    %1252 = vmatprep.subr.mxu0 %v995
    %1253 = vmatpush1.msra.mxu0 %v994
    %1254 = vmatprep.subr.mxu0 %v997
    %1255 = vmatpush1.msra.mxu0 %v996
    %1256 = vmatprep.subr.mxu0 %v999
    %1257 = vmatpush1.msra.mxu0 %v998
    %1258 = vmatprep.subr.mxu0 %v1001
    %1259 = vmatpush1.msra.mxu0 %v1000
    %1260 = vmatprep.subr.mxu0 %v1003
    %1261 = vmatpush1.msra.mxu0 %v1002
    %1262 = vmatprep.subr.mxu0 %v1005
    %1263 = vmatpush1.msra.mxu0 %v1004
    %1264 = vmatprep.subr.mxu0 0.0
    %1265 = vmatpush1.msra.mxu0 0.0
    %1266 = vmatprep.subr.mxu0 0.0
    %1267 = vmatpush1.msra.mxu0 0.0
    %1268 = vmatprep.subr.mxu0 0.0
    %1269 = vmatpush1.msra.mxu0 0.0
    %1270 = vmatprep.subr.mxu0 0.0
    %1271 = vmatpush1.msra.mxu0 0.0
    %1272 = vmatprep.subr.mxu0 0.0
    %1273 = vmatpush1.msra.mxu0 0.0
    %1274 = vmatprep.subr.mxu0 0.0
    %1275 = vmatpush1.msra.mxu0 0.0
    %1276 = vmatprep.subr.mxu0 0.0
    %1277 = vmatpush1.msra.mxu0 0.0
    %1278 = vmatprep.subr.mxu0 0.0
    %1279 = vmatpush1.msra.mxu0 0.0
    %1280 = vmatprep.subr.mxu0 0.0
    %1281 = vmatpush1.msra.mxu0 0.0
    %1282 = vmatprep.subr.mxu0 0.0
    %1283 = vmatpush1.msra.mxu0 0.0
    %1284 = vmatprep.subr.mxu0 0.0
    %1285 = vmatpush1.msra.mxu0 0.0
    %1286 = vmatprep.subr.mxu0 0.0
    %1287 = vmatpush1.msra.mxu0 0.0
    %1288 = vmatprep.subr.mxu0 0.0
    %1289 = vmatpush1.msra.mxu0 0.0
    %1290 = vmatprep.subr.mxu0 0.0
    %1291 = vmatpush1.msra.mxu0 0.0
    %1292 = vmatprep.subr.mxu0 0.0
    %1293 = vmatpush1.msra.mxu0 0.0
    %1294 = vmatprep.subr.mxu0 0.0
    %1295 = vmatpush1.msra.mxu0 0.0
    %1296 = vmatprep.mubr.f32.mxu0 0.0
    %1297 = vmatmul.mubr.f32.gmra.mrb[0].mxu0 %v838
    %v1298 = vpop.f32.mrb[0].mxu0
    %v1299 = vadd.f32 %v1186, %v1298
    %v1300 = vpop.f32.mrb[0].mxu0
    %v1301 = vadd.f32 %v1188, %v1300
    %1302 = vmatprep.mubr.f32.mxu0 0.0
    %1303 = vmatmul.mubr.f32.gmra.mrb[0].mxu0 %v839
    %v1304 = vpop.f32.mrb[0].mxu0
    %v1305 = vadd.f32 %v1192, %v1304
    %v1306 = vpop.f32.mrb[0].mxu0
    %v1307 = vadd.f32 %v1194, %v1306
    %1308 = vmatprep.mubr.f32.mxu0 0.0
    %1309 = vmatmul.mubr.f32.gmra.mrb[0].mxu0 %v840
    %v1310 = vpop.f32.mrb[0].mxu0
    %v1311 = vadd.f32 %v1198, %v1310
    %v1312 = vpop.f32.mrb[0].mxu0
    %v1313 = vadd.f32 %v1200, %v1312
    %1314 = vmatprep.mubr.f32.mxu0 0.0
    %1315 = vmatmul.mubr.f32.gmra.mrb[0].mxu0 %v841
    %v1316 = vpop.f32.mrb[0].mxu0
    %v1317 = vadd.f32 %v1204, %v1316
    %v1318 = vpop.f32.mrb[0].mxu0
    %v1319 = vadd.f32 %v1206, %v1318
    %1320 = vmatprep.mubr.f32.mxu0 0.0
    %1321 = vmatmul.mubr.f32.gmra.mrb[0].mxu0 %v842
    %v1322 = vpop.f32.mrb[0].mxu0
    %v1323 = vadd.f32 %v1210, %v1322
    %v1324 = vpop.f32.mrb[0].mxu0
    %v1325 = vadd.f32 %v1212, %v1324
    %1326 = vmatprep.mubr.f32.mxu0 0.0
    %1327 = vmatmul.mubr.f32.gmra.mrb[0].mxu0 %v843
    %v1328 = vpop.f32.mrb[0].mxu0
    %v1329 = vadd.f32 %v1216, %v1328
    %v1330 = vpop.f32.mrb[0].mxu0
    %v1331 = vadd.f32 %v1218, %v1330
    %1332 = vmatprep.mubr.f32.mxu0 0.0
    %1333 = vmatmul.mubr.f32.gmra.mrb[0].mxu0 %v844
    %v1334 = vpop.f32.mrb[0].mxu0
    %v1335 = vadd.f32 %v1222, %v1334
    %v1336 = vpop.f32.mrb[0].mxu0
    %v1337 = vadd.f32 %v1224, %v1336
    %1338 = vmatprep.mubr.f32.mxu0 0.0
    %1339 = vmatmul.mubr.f32.gmra.mrb[0].mxu0 %v845
    %v1340 = vpop.f32.mrb[0].mxu0
    %v1341 = vadd.f32 %v1228, %v1340
    %v1342 = vpop.f32.mrb[0].mxu0
    %v1343 = vadd.f32 %v1230, %v1342
    %1344 = vdwg.mxu0
    %v1345 = vmax.f32 %v1299, %v1305
    %v1346 = vmax.f32 %v1301, %v1307
    %v1347 = vmax.f32 %v1311, %v1317
    %v1348 = vmax.f32 %v1313, %v1319
    %v1349 = vmax.f32 %v1323, %v1329
    %v1350 = vmax.f32 %v1325, %v1331
    %v1351 = vmax.f32 %v1335, %v1341
    %v1352 = vmax.f32 %v1337, %v1343
    %v1353 = vmax.f32 %v1345, %v1346
    %v1354 = vmax.f32 %v1347, %v1348
    %v1355 = vmax.f32 %v1349, %v1350
    %v1356 = vmax.f32 %v1351, %v1352
    %v1357 = vlaneseq
    %v1358 = vshrl.u32 %v1357, 7
    %v1359 = vsub.s32 1, %v1358
    %v1360 = vrot.slane %v65, %v1359
    %v1361 = vadd.f32 %v1353, %v1360
    %v1362 = vadd.f32 %v1354, %v1360
    %v1363 = vadd.f32 %v1355, %v1360
    %v1364 = vadd.f32 %v1356, %v1360
    %v1365 = vmax.f32 %v1361, 0.0
    %v1366 = vmax.f32 %v1362, 0.0
    %v1367 = vmax.f32 %v1363, 0.0
    %v1368 = vmax.f32 %v1364, 0.0
    %v1369 = vld [vmem:[%s3] sm:$0xff]
    %v1370 = vld [vmem:[%s3 + $0x8] sm:$0xff]
    %v1371 = vld [vmem:[%s3 + $0x10] sm:$0xff]
    %v1372 = vld [vmem:[%s3 + $0x18] sm:$0xff]
    %v1373 = vld [vmem:[%s3 + $0x20] sm:$0xff]
    %v1374 = vld [vmem:[%s3 + $0x28] sm:$0xff]
    %v1375 = vld [vmem:[%s3 + $0x30] sm:$0xff]
    %v1376 = vld [vmem:[%s3 + $0x38] sm:$0xff]
    %v1377 = vld [vmem:[%s3 + $0x40] sm:$0xff]
    %v1378 = vld [vmem:[%s3 + $0x48] sm:$0xff]
    %v1379 = vld [vmem:[%s3 + $0x50] sm:$0xff]
    %v1380 = vld [vmem:[%s3 + $0x58] sm:$0xff]
    %v1381 = vld [vmem:[%s3 + $0x60] sm:$0xff]
    %v1382 = vld [vmem:[%s3 + $0x68] sm:$0xff]
    %v1383 = vld [vmem:[%s3 + $0x70] sm:$0xff]
    %v1384 = vld [vmem:[%s3 + $0x78] sm:$0xff]
    %v1385 = vld [vmem:[%s3 + $0x80] sm:$0xff]
    %v1386 = vld [vmem:[%s3 + $0x88] sm:$0xff]
    %v1387 = vld [vmem:[%s3 + $0x90] sm:$0xff]
    %v1388 = vld [vmem:[%s3 + $0x98] sm:$0xff]
    %v1389 = vld [vmem:[%s3 + $0xa0] sm:$0xff]
    %v1390 = vld [vmem:[%s3 + $0xa8] sm:$0xff]
    %v1391 = vld [vmem:[%s3 + $0xb0] sm:$0xff]
    %v1392 = vld [vmem:[%s3 + $0xb8] sm:$0xff]
    %v1393 = vld [vmem:[%s3 + $0xc0] sm:$0xff]
    %v1394 = vld [vmem:[%s3 + $0xc8] sm:$0xff]
    %v1395 = vld [vmem:[%s3 + $0xd0] sm:$0xff]
    %v1396 = vld [vmem:[%s3 + $0xd8] sm:$0xff]
    %v1397 = vld [vmem:[%s3 + $0xe0] sm:$0xff]
    %v1398 = vld [vmem:[%s3 + $0xe8] sm:$0xff]
    %v1399 = vld [vmem:[%s3 + $0xf0] sm:$0xff]
    %v1400 = vld [vmem:[%s3 + $0xf8] sm:$0xff]
    %v1401 = vld [vmem:[%s3 + $0x100] sm:$0xff]
    %v1402 = vld [vmem:[%s3 + $0x108] sm:$0xff]
    %v1403 = vld [vmem:[%s3 + $0x110] sm:$0xff]
    %v1404 = vld [vmem:[%s3 + $0x118] sm:$0xff]
    %v1405 = vld [vmem:[%s3 + $0x120] sm:$0xff]
    %v1406 = vld [vmem:[%s3 + $0x128] sm:$0xff]
    %v1407 = vld [vmem:[%s3 + $0x130] sm:$0xff]
    %v1408 = vld [vmem:[%s3 + $0x138] sm:$0xff]
    %v1409 = vld [vmem:[%s3 + $0x140] sm:$0xff]
    %v1410 = vld [vmem:[%s3 + $0x148] sm:$0xff]
    %v1411 = vld [vmem:[%s3 + $0x150] sm:$0xff]
    %v1412 = vld [vmem:[%s3 + $0x158] sm:$0xff]
    %v1413 = vld [vmem:[%s3 + $0x160] sm:$0xff]
    %v1414 = vld [vmem:[%s3 + $0x168] sm:$0xff]
    %v1415 = vld [vmem:[%s3 + $0x170] sm:$0xff]
    %v1416 = vld [vmem:[%s3 + $0x178] sm:$0xff]
    %v1417 = vld [vmem:[%s3 + $0x180] sm:$0xff]
    %v1418 = vld [vmem:[%s3 + $0x188] sm:$0xff]
    %v1419 = vld [vmem:[%s3 + $0x190] sm:$0xff]
    %v1420 = vld [vmem:[%s3 + $0x198] sm:$0xff]
    %v1421 = vld [vmem:[%s3 + $0x1a0] sm:$0xff]
    %v1422 = vld [vmem:[%s3 + $0x1a8] sm:$0xff]
    %v1423 = vld [vmem:[%s3 + $0x1b0] sm:$0xff]
    %v1424 = vld [vmem:[%s3 + $0x1b8] sm:$0xff]
    %v1425 = vld [vmem:[%s3 + $0x1c0] sm:$0xff]
    %v1426 = vld [vmem:[%s3 + $0x1c8] sm:$0xff]
    %v1427 = vld [vmem:[%s3 + $0x1d0] sm:$0xff]
    %v1428 = vld [vmem:[%s3 + $0x1d8] sm:$0xff]
    %v1429 = vld [vmem:[%s3 + $0x1e0] sm:$0xff]
    %v1430 = vld [vmem:[%s3 + $0x1e8] sm:$0xff]
    %v1431 = vld [vmem:[%s3 + $0x1f0] sm:$0xff]
    %v1432 = vld [vmem:[%s3 + $0x1f8] sm:$0xff]
    %v1433 = vlaneseq
    %v1434 = vshrl.u32 %v1433, 7
    %v1435 = vsub.s32 2, %v1434
    %v1436 = vrot.slane %v65, %v1435
    %1437 = vmatprep.subr.mxu0 0.0
    %1438 = vmatpush1.msra.mxu0 %v1369
    %1439 = vmatprep.subr.mxu0 0.0
    %1440 = vmatpush1.msra.mxu0 %v1370
    %1441 = vmatprep.subr.mxu0 0.0
    %1442 = vmatpush1.msra.mxu0 %v1371
    %1443 = vmatprep.subr.mxu0 0.0
    %1444 = vmatpush1.msra.mxu0 %v1372
    %1445 = vmatprep.subr.mxu0 0.0
    %1446 = vmatpush1.msra.mxu0 %v1373
    %1447 = vmatprep.subr.mxu0 0.0
    %1448 = vmatpush1.msra.mxu0 %v1374
    %1449 = vmatprep.subr.mxu0 0.0
    %1450 = vmatpush1.msra.mxu0 %v1375
    %1451 = vmatprep.subr.mxu0 0.0
    %1452 = vmatpush1.msra.mxu0 %v1376
    %1453 = vmatprep.subr.mxu0 0.0
    %1454 = vmatpush1.msra.mxu0 %v1377
    %1455 = vmatprep.subr.mxu0 0.0
    %1456 = vmatpush1.msra.mxu0 %v1378
    %1457 = vmatprep.subr.mxu0 0.0
    %1458 = vmatpush1.msra.mxu0 %v1379
    %1459 = vmatprep.subr.mxu0 0.0
    %1460 = vmatpush1.msra.mxu0 %v1380
    %1461 = vmatprep.subr.mxu0 0.0
    %1462 = vmatpush1.msra.mxu0 %v1381
    %1463 = vmatprep.subr.mxu0 0.0
    %1464 = vmatpush1.msra.mxu0 %v1382
    %1465 = vmatprep.subr.mxu0 0.0
    %1466 = vmatpush1.msra.mxu0 %v1383
    %1467 = vmatprep.subr.mxu0 0.0
    %1468 = vmatpush1.msra.mxu0 %v1384
    %1469 = vmatprep.subr.mxu0 0.0
    %1470 = vmatpush1.msra.mxu0 %v1385
    %1471 = vmatprep.subr.mxu0 0.0
    %1472 = vmatpush1.msra.mxu0 %v1386
    %1473 = vmatprep.subr.mxu0 0.0
    %1474 = vmatpush1.msra.mxu0 %v1387
    %1475 = vmatprep.subr.mxu0 0.0
    %1476 = vmatpush1.msra.mxu0 %v1388
    %1477 = vmatprep.subr.mxu0 0.0
    %1478 = vmatpush1.msra.mxu0 %v1389
    %1479 = vmatprep.subr.mxu0 0.0
    %1480 = vmatpush1.msra.mxu0 %v1390
    %1481 = vmatprep.subr.mxu0 0.0
    %1482 = vmatpush1.msra.mxu0 %v1391
    %1483 = vmatprep.subr.mxu0 0.0
    %1484 = vmatpush1.msra.mxu0 %v1392
    %1485 = vmatprep.subr.mxu0 0.0
    %1486 = vmatpush1.msra.mxu0 %v1393
    %1487 = vmatprep.subr.mxu0 0.0
    %1488 = vmatpush1.msra.mxu0 %v1394
    %1489 = vmatprep.subr.mxu0 0.0
    %1490 = vmatpush1.msra.mxu0 %v1395
    %1491 = vmatprep.subr.mxu0 0.0
    %1492 = vmatpush1.msra.mxu0 %v1396
    %1493 = vmatprep.subr.mxu0 0.0
    %1494 = vmatpush1.msra.mxu0 %v1397
    %1495 = vmatprep.subr.mxu0 0.0
    %1496 = vmatpush1.msra.mxu0 %v1398
    %1497 = vmatprep.subr.mxu0 0.0
    %1498 = vmatpush1.msra.mxu0 %v1399
    %1499 = vmatprep.subr.mxu0 0.0
    %1500 = vmatpush1.msra.mxu0 %v1400
    %1501 = vmatprep.mubr.f32.mxu0 %v1366
    %1502 = vmatmul.mubr.f32.gmra.mrb[0].mxu0 %v1365
    %v1503 = vpop.f32.mrb[0].mxu0
    %v1504 = vadd.f32 %v1436, %v1503
    %v1505 = vpop.f32.mrb[0].mxu0
    %1506 = vdwg.mxu0
    %1507 = vmatprep.subr.mxu0 0.0
    %1508 = vmatpush1.msra.mxu0 %v1401
    %1509 = vmatprep.subr.mxu0 0.0
    %1510 = vmatpush1.msra.mxu0 %v1402
    %1511 = vmatprep.subr.mxu0 0.0
    %1512 = vmatpush1.msra.mxu0 %v1403
    %1513 = vmatprep.subr.mxu0 0.0
    %1514 = vmatpush1.msra.mxu0 %v1404
    %1515 = vmatprep.subr.mxu0 0.0
    %1516 = vmatpush1.msra.mxu0 %v1405
    %1517 = vmatprep.subr.mxu0 0.0
    %1518 = vmatpush1.msra.mxu0 %v1406
    %1519 = vmatprep.subr.mxu0 0.0
    %1520 = vmatpush1.msra.mxu0 %v1407
    %1521 = vmatprep.subr.mxu0 0.0
    %1522 = vmatpush1.msra.mxu0 %v1408
    %1523 = vmatprep.subr.mxu0 0.0
    %1524 = vmatpush1.msra.mxu0 %v1409
    %1525 = vmatprep.subr.mxu0 0.0
    %1526 = vmatpush1.msra.mxu0 %v1410
    %1527 = vmatprep.subr.mxu0 0.0
    %1528 = vmatpush1.msra.mxu0 %v1411
    %1529 = vmatprep.subr.mxu0 0.0
    %1530 = vmatpush1.msra.mxu0 %v1412
    %1531 = vmatprep.subr.mxu0 0.0
    %1532 = vmatpush1.msra.mxu0 %v1413
    %1533 = vmatprep.subr.mxu0 0.0
    %1534 = vmatpush1.msra.mxu0 %v1414
    %1535 = vmatprep.subr.mxu0 0.0
    %1536 = vmatpush1.msra.mxu0 %v1415
    %1537 = vmatprep.subr.mxu0 0.0
    %1538 = vmatpush1.msra.mxu0 %v1416
    %1539 = vmatprep.subr.mxu0 0.0
    %1540 = vmatpush1.msra.mxu0 %v1417
    %1541 = vmatprep.subr.mxu0 0.0
    %1542 = vmatpush1.msra.mxu0 %v1418
    %1543 = vmatprep.subr.mxu0 0.0
    %1544 = vmatpush1.msra.mxu0 %v1419
    %1545 = vmatprep.subr.mxu0 0.0
    %1546 = vmatpush1.msra.mxu0 %v1420
    %1547 = vmatprep.subr.mxu0 0.0
    %1548 = vmatpush1.msra.mxu0 %v1421
    %1549 = vmatprep.subr.mxu0 0.0
    %1550 = vmatpush1.msra.mxu0 %v1422
    %1551 = vmatprep.subr.mxu0 0.0
    %1552 = vmatpush1.msra.mxu0 %v1423
    %1553 = vmatprep.subr.mxu0 0.0
    %1554 = vmatpush1.msra.mxu0 %v1424
    %1555 = vmatprep.subr.mxu0 0.0
    %1556 = vmatpush1.msra.mxu0 %v1425
    %1557 = vmatprep.subr.mxu0 0.0
    %1558 = vmatpush1.msra.mxu0 %v1426
    %1559 = vmatprep.subr.mxu0 0.0
    %1560 = vmatpush1.msra.mxu0 %v1427
    %1561 = vmatprep.subr.mxu0 0.0
    %1562 = vmatpush1.msra.mxu0 %v1428
    %1563 = vmatprep.subr.mxu0 0.0
    %1564 = vmatpush1.msra.mxu0 %v1429
    %1565 = vmatprep.subr.mxu0 0.0
    %1566 = vmatpush1.msra.mxu0 %v1430
    %1567 = vmatprep.subr.mxu0 0.0
    %1568 = vmatpush1.msra.mxu0 %v1431
    %1569 = vmatprep.subr.mxu0 0.0
    %1570 = vmatpush1.msra.mxu0 %v1432
    %1571 = vmatprep.mubr.f32.mxu0 %v1368
    %1572 = vmatmul.mubr.f32.gmra.mrb[0].mxu0 %v1367
    %v1573 = vpop.f32.mrb[0].mxu0
    %v1574 = vadd.f32 %v1504, %v1573
    %v1575 = vpop.f32.mrb[0].mxu0
    %1576 = vdwg.mxu0
    %v1577 = vmax.f32 %v1574, 0.0
    %v1578 = vld [vmem:[%s4] sm:$0xff]
    %v1579 = vld [vmem:[%s4 + $0x8] sm:$0xff]
    %v1580 = vld [vmem:[%s4 + $0x10] sm:$0xff]
    %v1581 = vld [vmem:[%s4 + $0x18] sm:$0xff]
    %v1582 = vld [vmem:[%s4 + $0x20] sm:$0xff]
    %v1583 = vld [vmem:[%s4 + $0x28] sm:$0xff]
    %v1584 = vld [vmem:[%s4 + $0x30] sm:$0x3]
    %v1585 = vlaneseq
    %v1586 = vshrl.u32 %v1585, 7
    %v1587 = vsub.s32 3, %v1586
    %v1588 = vrot.slane %v65, %v1587
    %vm1589 = vcmask 408576
    %v1591 = vsel %vm1589, %v1577, 0
    %vm1593 = vcmask 1041408
    %v1595 = vsel %vm1593, %v1584, 0
    %1597 = vmatprep.subr.mxu0 0.0
    %1598 = vmatpush1.msra.mxu0 %v1578
    %1599 = vmatprep.subr.mxu0 0.0
    %1600 = vmatpush1.msra.mxu0 %v1579
    %1601 = vmatprep.subr.mxu0 0.0
    %1602 = vmatpush1.msra.mxu0 %v1580
    %1603 = vmatprep.subr.mxu0 0.0
    %1604 = vmatpush1.msra.mxu0 %v1581
    %1605 = vmatprep.subr.mxu0 0.0
    %1606 = vmatpush1.msra.mxu0 %v1582
    %1607 = vmatprep.subr.mxu0 0.0
    %1608 = vmatpush1.msra.mxu0 %v1583
    %1609 = vmatprep.subr.mxu0 0.0
    %1610 = vmatpush1.msra.mxu0 %v1595
    %1611 = vmatprep.subr.mxu0 0.0
    %1612 = vmatpush1.msra.mxu0 0.0
    %1613 = vmatprep.subr.mxu0 0.0
    %1614 = vmatpush1.msra.mxu0 0.0
    %1615 = vmatprep.subr.mxu0 0.0
    %1616 = vmatpush1.msra.mxu0 0.0
    %1617 = vmatprep.subr.mxu0 0.0
    %1618 = vmatpush1.msra.mxu0 0.0
    %1619 = vmatprep.subr.mxu0 0.0
    %1620 = vmatpush1.msra.mxu0 0.0
    %1621 = vmatprep.subr.mxu0 0.0
    %1622 = vmatpush1.msra.mxu0 0.0
    %1623 = vmatprep.subr.mxu0 0.0
    %1624 = vmatpush1.msra.mxu0 0.0
    %1625 = vmatprep.subr.mxu0 0.0
    %1626 = vmatpush1.msra.mxu0 0.0
    %1627 = vmatprep.subr.mxu0 0.0
    %1628 = vmatpush1.msra.mxu0 0.0
    %1629 = vmatprep.subr.mxu0 0.0
    %1630 = vmatpush1.msra.mxu0 0.0
    %1631 = vmatprep.subr.mxu0 0.0
    %1632 = vmatpush1.msra.mxu0 0.0
    %1633 = vmatprep.subr.mxu0 0.0
    %1634 = vmatpush1.msra.mxu0 0.0
    %1635 = vmatprep.subr.mxu0 0.0
    %1636 = vmatpush1.msra.mxu0 0.0
    %1637 = vmatprep.subr.mxu0 0.0
    %1638 = vmatpush1.msra.mxu0 0.0
    %1639 = vmatprep.subr.mxu0 0.0
    %1640 = vmatpush1.msra.mxu0 0.0
    %1641 = vmatprep.subr.mxu0 0.0
    %1642 = vmatpush1.msra.mxu0 0.0
    %1643 = vmatprep.subr.mxu0 0.0
    %1644 = vmatpush1.msra.mxu0 0.0
    %1645 = vmatprep.subr.mxu0 0.0
    %1646 = vmatpush1.msra.mxu0 0.0
    %1647 = vmatprep.subr.mxu0 0.0
    %1648 = vmatpush1.msra.mxu0 0.0
    %1649 = vmatprep.subr.mxu0 0.0
    %1650 = vmatpush1.msra.mxu0 0.0
    %1651 = vmatprep.subr.mxu0 0.0
    %1652 = vmatpush1.msra.mxu0 0.0
    %1653 = vmatprep.subr.mxu0 0.0
    %1654 = vmatpush1.msra.mxu0 0.0
    %1655 = vmatprep.subr.mxu0 0.0
    %1656 = vmatpush1.msra.mxu0 0.0
    %1657 = vmatprep.subr.mxu0 0.0
    %1658 = vmatpush1.msra.mxu0 0.0
    %1659 = vmatprep.subr.mxu0 0.0
    %1660 = vmatpush1.msra.mxu0 0.0
    %1661 = vmatprep.mubr.f32.mxu0 0.0
    %1662 = vmatmul.mubr.f32.gmra.mrb[0].mxu0 %v1591
    %v1663 = vpop.f32.mrb[0].mxu0
    %v1664 = vadd.f32 %v1588, %v1663
    %v1665 = vpop.f32.mrb[0].mxu0
    %1666 = vdwg.mxu0
    %1667 = vmax.xlane.f32.xlu0 %v1664
    %v1668 = vpop.xlane.xlu0 %1667
    %v1669 = vsub.f32 %v1664, %v1668
    %v1670 = vmul.f32 %v1669, 1.442695
    %v1671 = vpow.pop %v1670
    %1672 = vadd.xlane.f32.xlu0 %v1671
    %v1673 = vpop.xlane.xlu0 %1672
    %v1674 = vlog2.pop %v1673
    %v1675 = vmul.f32 %v1674, 0.6931472
    %v1676 = vsub.f32 %v1669, %v1675
    %1677 = vst [vmem:[%s6] sm:$0xff] %v1676
    // Predicated region
    $region30: #{forward.1} parent=1 // pred_check
      _
    $region31: #{forward.1} parent=1 // pred_check_branch
      %1679 = sbr.rel (0) target = $region33
    $region32: #{forward.1} parent=1 // pred_region
      _
    $region33: #{forward.1} parent=1 // pred_fallthru
      _
    // Predicated region
    $region34: #{forward.1} parent=1 // pred_check
      _
    $region35: #{forward.1} parent=1 // pred_check_branch
      %1681 = sbr.rel (0) target = $region37
    $region36: #{forward.1} parent=1 // pred_region
      _
    $region37: #{forward.1} parent=1 // pred_fallthru
      _
    %1682 = vsyncpa [#allocation3], 1

</llo_original>
